<compile_context>
chip_gen: v5e
topology: v5e:2x2
jax: 0.10.0
libtpu: 0.0.40
codegen_flags: <defaults>
</compile_context>

<pallas_src>
import functools
import numpy as np

import jax
import jax.numpy as jnp
from jax.experimental import pallas as pl
from jax.experimental.pallas import tpu as pltpu


def _gaussian_window(filter_size, sigma):
    coords = np.arange(filter_size, dtype=np.float64) - (filter_size - 1) / 2.0
    g = np.exp(-(coords ** 2) / (2.0 * sigma ** 2))
    return g / g.sum()


def _banded_bw(w, wv, wv_pad, filter_size, sigma):
    """(w, wv_pad) matrix s.t. X @ bw == horizontal VALID Gaussian conv.

    Columns >= wv are zero so the matmul output is lane-dense (wv_pad % 128 == 0).
    """
    g = _gaussian_window(filter_size, sigma)
    bw = np.zeros((w, wv_pad), dtype=np.float64)
    for j in range(wv):
        bw[j:j + filter_size, j] = g
    return jnp.asarray(bw, dtype=jnp.float32)


def _vmem_limit_bytes():
    cap = 64 * 1024 * 1024
    try:
        cap = int(pltpu.get_tpu_info().vmem_capacity_bytes)
    except Exception:
        pass
    limit = int(min(cap * 0.8, 100 * 1024 * 1024))
    return max(limit, 32 * 1024 * 1024)


def _pick_planes_per_step(nc, per_plane_bytes, budget_bytes, max_p=256):
    """Largest divisor of nc that fits the VMEM budget; prefer an even, >=2
    number of grid blocks so the parallel axis can be sharded across two TCs."""
    cap = int(max(1, min(nc, max_p, budget_bytes // max(per_plane_bytes, 1))))
    divisors = [d for d in range(1, nc + 1) if nc % d == 0 and d <= cap]
    even = [d for d in divisors if (nc // d) % 2 == 0]
    pool = even if even else divisors
    return max(pool)


def _l1_cssim_kernel(x_ref, y_ref, bw_ref, ssim_ref, l1_ref, *,
                     p, hv, wv, wv_pad, filter_size, taps, c1, c2):
    x = x_ref[...].astype(jnp.float32)      # (P, H, W)
    y = y_ref[...].astype(jnp.float32)      # (P, H, W)
    bw = bw_ref[...]                        # (W, wv_pad) zero-padded banded taps
    _, h, w = x.shape

    # --- horizontal Gaussian pass: one 2-D MXU matmul per signal --------------
    def hconv(a):
        r = jnp.dot(a.reshape(p * h, w), bw, preferred_element_type=jnp.float32)
        return r.reshape(p, h, wv_pad)

    hx, hy = hconv(x), hconv(y)
    hxx, hyy, hxy = hconv(x * x), hconv(y * y), hconv(x * y)

    # --- vertical Gaussian pass: 11 static tap FMAs on the VPU ----------------
    def vconv(a):
        acc = taps[0] * a[:, 0:hv, :]
        for t in range(1, filter_size):
            acc = acc + taps[t] * a[:, t:t + hv, :]
        return acc

    mu_x, mu_y = vconv(hx), vconv(hy)
    e_xx, e_yy, e_xy = vconv(hxx), vconv(hyy), vconv(hxy)

    var_x = e_xx - mu_x * mu_x
    var_y = e_yy - mu_y * mu_y
    cov_xy = e_xy - mu_x * mu_y

    num = (2.0 * mu_x * mu_y + c1) * (2.0 * cov_xy + c2)
    den = (mu_x * mu_x + mu_y * mu_y + c1) * (var_x + var_y + c2)
    ssim_map = num * pl.reciprocal(den, approx=True)      # EUP slot, VALU-free

    # Padded lanes evaluate to ssim == 1; mask them out of the reduction.
    lane = jax.lax.broadcasted_iota(jnp.int32, ssim_map.shape, 2)
    ssim_sum = jnp.sum(jnp.where(lane < wv, ssim_map, 0.0))
    l1_sum = jnp.sum(jnp.abs(x - y))

    # Per-block partial sums: each grid step owns its own lane-dense tile, so
    # the grid axis stays "parallel" (no cross-step accumulator).
    ssim_ref[...] = jnp.full(ssim_ref.shape, ssim_sum, dtype=jnp.float32)
    l1_ref[...] = jnp.full(l1_ref.shape, l1_sum, dtype=jnp.float32)


def l1_cssim_loss(inp, target, *, l1_weight, max_val=1.0, filter_size=11,
                  k1=0.01, k2=0.03, sigma=1.5):
    """Equivalent of L1CSSIM.forward with reduction='mean'."""
    assert inp.shape == target.shape
    n, c, h, w = inp.shape
    nc = n * c
    hv = h - filter_size + 1
    wv = w - filter_size + 1
    assert hv > 0 and wv > 0, "spatial dims must be >= filter_size"
    wv_pad = ((wv + 127) // 128) * 128

    bw = _banded_bw(w, wv, wv_pad, filter_size, sigma)
    taps = tuple(float(t) for t in _gaussian_window(filter_size, sigma))
    c1 = float((k1 * max_val) ** 2)
    c2 = float((k2 * max_val) ** 2)

    xf = inp.reshape(nc, h, w)
    yf = target.reshape(nc, h, w)

    # Working-set model (bytes per plane, f32): inputs (double-buffered) +
    # transient products + 5 horizontal-pass results + stats/epilogue temps.
    vmem_limit = _vmem_limit_bytes()
    per_plane = 4 * (5 * h * w + 5 * h * wv_pad + 10 * hv * wv_pad)
    p = _pick_planes_per_step(nc, per_plane, vmem_limit // 2)
    n_blocks = nc // p

    kernel = functools.partial(_l1_cssim_kernel, p=p, hv=hv, wv=wv,
                               wv_pad=wv_pad, filter_size=filter_size,
                               taps=taps, c1=c1, c2=c2)

    flops = nc * (2 * 5 * h * w * wv_pad          # horizontal matmuls
                  + 2 * 5 * filter_size * hv * wv_pad  # vertical tap FMAs
                  + 30 * hv * wv_pad)             # epilogue elementwise
    bytes_accessed = (2 * nc * h * w * inp.dtype.itemsize
                      + w * wv_pad * 4 + 2 * n_blocks * 8 * 128 * 4)

    ssim_part, l1_part = pl.pallas_call(
        kernel,
        out_shape=(jax.ShapeDtypeStruct((n_blocks, 8, 128), jnp.float32),
                   jax.ShapeDtypeStruct((n_blocks, 8, 128), jnp.float32)),
        grid_spec=pltpu.PrefetchScalarGridSpec(
            num_scalar_prefetch=0,
            grid=(n_blocks,),
            in_specs=[
                pl.BlockSpec((p, h, w), lambda i: (i, 0, 0)),
                pl.BlockSpec((p, h, w), lambda i: (i, 0, 0)),
                pl.BlockSpec((w, wv_pad), lambda i: (0, 0)),   # banded taps, loaded once
            ],
            out_specs=(
                pl.BlockSpec((1, 8, 128), lambda i: (i, 0, 0)),
                pl.BlockSpec((1, 8, 128), lambda i: (i, 0, 0)),
            ),
        ),
        compiler_params=pltpu.CompilerParams(
            dimension_semantics=("parallel",),
            vmem_limit_bytes=vmem_limit),
        cost_estimate=pl.CostEstimate(
            flops=int(flops), transcendentals=int(nc * hv * wv_pad),
            bytes_accessed=int(bytes_accessed)),
    )(xf, yf, bw)

    ssim_mean = jnp.sum(ssim_part[:, 0, 0]) / jnp.float32(nc * hv * wv)
    l1_mean = jnp.sum(l1_part[:, 0, 0]) / jnp.float32(nc * h * w)
    return (1.0 - ssim_mean) + jnp.float32(l1_weight) * l1_mean


def _l1_cssim_reference(inp, target, *, l1_weight, max_val=1.0, filter_size=11,
                        k1=0.01, k2=0.03, sigma=1.5):
    """Pure-JAX reference (tap-slice conv) for a correctness sanity check."""
    g = jnp.asarray(_gaussian_window(filter_size, sigma), dtype=jnp.float32)
    n, c, h, w = inp.shape
    x = inp.reshape(n * c, h, w).astype(jnp.float32)
    y = target.reshape(n * c, h, w).astype(jnp.float32)
    hv = h - filter_size + 1
    wv = w - filter_size + 1

    def conv(img):
        acc = jnp.zeros((img.shape[0], h, wv), jnp.float32)
        for t in range(filter_size):
            acc = acc + g[t] * img[:, :, t:t + wv]
        out = jnp.zeros((img.shape[0], hv, wv), jnp.float32)
        for t in range(filter_size):
            out = out + g[t] * acc[:, t:t + hv, :]
        return out

    mu_x, mu_y = conv(x), conv(y)
    var_x = conv(x * x) - mu_x * mu_x
    var_y = conv(y * y) - mu_y * mu_y
    cov = conv(x * y) - mu_x * mu_y
    c1 = (k1 * max_val) ** 2
    c2 = (k2 * max_val) ** 2
    ssim = ((2 * mu_x * mu_y + c1) * (2 * cov + c2)) / (
        (mu_x * mu_x + mu_y * mu_y + c1) * (var_x + var_y + c2))
    return (1.0 - jnp.mean(ssim)) + l1_weight * jnp.mean(jnp.abs(x - y))


if __name__ == "__main__":
    key = jax.random.PRNGKey(0)
    kx, ky = jax.random.split(key)
    # NCHW inputs; spatial dims must be >= filter_size=11.
    x = jax.random.uniform(kx, (2, 4, 16, 16), dtype=jnp.float32)
    y = jax.random.uniform(ky, (2, 4, 16, 16), dtype=jnp.float32)

    loss = jax.block_until_ready(l1_cssim_loss(x, y, l1_weight=0.5, max_val=1.0))
    ref = jax.block_until_ready(_l1_cssim_reference(x, y, l1_weight=0.5, max_val=1.0))

    assert loss.shape == () and bool(jnp.isfinite(loss))
    assert abs(float(loss) - float(ref)) < 2e-2, (float(loss), float(ref))
    print("KERNEL_OK")
</pallas_src>

<mosaic_0001>
module attributes {stable_mosaic.version = 11 : i64} {
  func.func @_l1_cssim_kernel(%arg0: i32, %arg1: memref<4x16x16xf32, #tpu.memory_space<vmem>>, %arg2: memref<4x16x16xf32, #tpu.memory_space<vmem>>, %arg3: memref<16x128xf32, #tpu.memory_space<vmem>>, %arg4: memref<1x8x128xf32, #tpu.memory_space<vmem>>, %arg5: memref<1x8x128xf32, #tpu.memory_space<vmem>>) attributes {dimension_semantics = [#tpu.dimension_semantics<parallel>], iteration_bounds = array<i64: 2>, scalar_prefetch = 0 : i64, scratch_operands = 0 : i64, tpu.core_type = #tpu.core_type<tc>, window_params = [{transform_indices = @transform_0, window_bounds = array<i64: 4, 16, 16>}, {transform_indices = @transform_1, window_bounds = array<i64: 4, 16, 16>}, {pipeline_mode = #tpu.pipeline_mode<synchronous>, transform_indices = @transform_2, window_bounds = array<i64: 16, 128>}, {transform_indices = @transform_3, window_bounds = array<i64: 1, 8, 128>}, {transform_indices = @transform_4, window_bounds = array<i64: 1, 8, 128>}]} {
    %c0 = arith.constant 0 : index
    %c0_0 = arith.constant 0 : index
    %c0_1 = arith.constant 0 : index
    %0 = vector.load %arg1[%c0, %c0_0, %c0_1] : memref<4x16x16xf32, #tpu.memory_space<vmem>>, vector<4x16x16xf32>
    %c0_2 = arith.constant 0 : index
    %c0_3 = arith.constant 0 : index
    %c0_4 = arith.constant 0 : index
    %1 = vector.load %arg2[%c0_2, %c0_3, %c0_4] : memref<4x16x16xf32, #tpu.memory_space<vmem>>, vector<4x16x16xf32>
    %c0_5 = arith.constant 0 : index
    %c0_6 = arith.constant 0 : index
    %2 = vector.load %arg3[%c0_5, %c0_6] : memref<16x128xf32, #tpu.memory_space<vmem>>, vector<16x128xf32>
    %3 = vector.shape_cast %0 : vector<4x16x16xf32> to vector<64x16xf32>
    %cst = arith.constant dense<0.000000e+00> : vector<64x128xf32>
    %4 = tpu.matmul %3, %2, %cst {dimension_numbers = #tpu.dot_dimension_numbers<[1], [0], [0], [1], [0, 0, 1, 1], [], []>} : vector<64x16xf32>, vector<16x128xf32>, vector<64x128xf32> -> vector<64x128xf32>
    %5 = vector.shape_cast %4 : vector<64x128xf32> to vector<4x16x128xf32>
    %6 = vector.shape_cast %1 : vector<4x16x16xf32> to vector<64x16xf32>
    %cst_7 = arith.constant dense<0.000000e+00> : vector<64x128xf32>
    %7 = tpu.matmul %6, %2, %cst_7 {dimension_numbers = #tpu.dot_dimension_numbers<[1], [0], [0], [1], [0, 0, 1, 1], [], []>} : vector<64x16xf32>, vector<16x128xf32>, vector<64x128xf32> -> vector<64x128xf32>
    %8 = vector.shape_cast %7 : vector<64x128xf32> to vector<4x16x128xf32>
    %9 = arith.mulf %0, %0 : vector<4x16x16xf32>
    %10 = vector.shape_cast %9 : vector<4x16x16xf32> to vector<64x16xf32>
    %cst_8 = arith.constant dense<0.000000e+00> : vector<64x128xf32>
    %11 = tpu.matmul %10, %2, %cst_8 {dimension_numbers = #tpu.dot_dimension_numbers<[1], [0], [0], [1], [0, 0, 1, 1], [], []>} : vector<64x16xf32>, vector<16x128xf32>, vector<64x128xf32> -> vector<64x128xf32>
    %12 = vector.shape_cast %11 : vector<64x128xf32> to vector<4x16x128xf32>
    %13 = arith.mulf %1, %1 : vector<4x16x16xf32>
    %14 = vector.shape_cast %13 : vector<4x16x16xf32> to vector<64x16xf32>
    %cst_9 = arith.constant dense<0.000000e+00> : vector<64x128xf32>
    %15 = tpu.matmul %14, %2, %cst_9 {dimension_numbers = #tpu.dot_dimension_numbers<[1], [0], [0], [1], [0, 0, 1, 1], [], []>} : vector<64x16xf32>, vector<16x128xf32>, vector<64x128xf32> -> vector<64x128xf32>
    %16 = vector.shape_cast %15 : vector<64x128xf32> to vector<4x16x128xf32>
    %17 = arith.mulf %0, %1 : vector<4x16x16xf32>
    %18 = vector.shape_cast %17 : vector<4x16x16xf32> to vector<64x16xf32>
    %cst_10 = arith.constant dense<0.000000e+00> : vector<64x128xf32>
    %19 = tpu.matmul %18, %2, %cst_10 {dimension_numbers = #tpu.dot_dimension_numbers<[1], [0], [0], [1], [0, 0, 1, 1], [], []>} : vector<64x16xf32>, vector<16x128xf32>, vector<64x128xf32> -> vector<64x128xf32>
    %20 = vector.shape_cast %19 : vector<64x128xf32> to vector<4x16x128xf32>
    %21 = vector.extract_strided_slice %5 {offsets = [0, 0, 0], sizes = [4, 6, 128], strides = [1, 1, 1]} : vector<4x16x128xf32> to vector<4x6x128xf32>
    %cst_11 = arith.constant 0.00102838012 : f32
    %22 = vector.broadcast %cst_11 : f32 to vector<4x6x128xf32>
    %23 = arith.mulf %22, %21 : vector<4x6x128xf32>
    %24 = vector.extract_strided_slice %5 {offsets = [0, 1, 0], sizes = [4, 6, 128], strides = [1, 1, 1]} : vector<4x16x128xf32> to vector<4x6x128xf32>
    %cst_12 = arith.constant 0.00759875821 : f32
    %25 = vector.broadcast %cst_12 : f32 to vector<4x6x128xf32>
    %26 = arith.mulf %25, %24 : vector<4x6x128xf32>
    %27 = arith.addf %23, %26 : vector<4x6x128xf32>
    %28 = vector.extract_strided_slice %5 {offsets = [0, 2, 0], sizes = [4, 6, 128], strides = [1, 1, 1]} : vector<4x16x128xf32> to vector<4x6x128xf32>
    %cst_13 = arith.constant 0.0360007733 : f32
    %29 = vector.broadcast %cst_13 : f32 to vector<4x6x128xf32>
    %30 = arith.mulf %29, %28 : vector<4x6x128xf32>
    %31 = arith.addf %27, %30 : vector<4x6x128xf32>
    %32 = vector.extract_strided_slice %5 {offsets = [0, 3, 0], sizes = [4, 6, 128], strides = [1, 1, 1]} : vector<4x16x128xf32> to vector<4x6x128xf32>
    %cst_14 = arith.constant 0.109360687 : f32
    %33 = vector.broadcast %cst_14 : f32 to vector<4x6x128xf32>
    %34 = arith.mulf %33, %32 : vector<4x6x128xf32>
    %35 = arith.addf %31, %34 : vector<4x6x128xf32>
    %36 = vector.extract_strided_slice %5 {offsets = [0, 4, 0], sizes = [4, 6, 128], strides = [1, 1, 1]} : vector<4x16x128xf32> to vector<4x6x128xf32>
    %cst_15 = arith.constant 0.213005543 : f32
    %37 = vector.broadcast %cst_15 : f32 to vector<4x6x128xf32>
    %38 = arith.mulf %37, %36 : vector<4x6x128xf32>
    %39 = arith.addf %35, %38 : vector<4x6x128xf32>
    %40 = vector.extract_strided_slice %5 {offsets = [0, 5, 0], sizes = [4, 6, 128], strides = [1, 1, 1]} : vector<4x16x128xf32> to vector<4x6x128xf32>
    %cst_16 = arith.constant 0.266011715 : f32
    %41 = vector.broadcast %cst_16 : f32 to vector<4x6x128xf32>
    %42 = arith.mulf %41, %40 : vector<4x6x128xf32>
    %43 = arith.addf %39, %42 : vector<4x6x128xf32>
    %44 = vector.extract_strided_slice %5 {offsets = [0, 6, 0], sizes = [4, 6, 128], strides = [1, 1, 1]} : vector<4x16x128xf32> to vector<4x6x128xf32>
    %cst_17 = arith.constant 0.213005543 : f32
    %45 = vector.broadcast %cst_17 : f32 to vector<4x6x128xf32>
    %46 = arith.mulf %45, %44 : vector<4x6x128xf32>
    %47 = arith.addf %43, %46 : vector<4x6x128xf32>
    %48 = vector.extract_strided_slice %5 {offsets = [0, 7, 0], sizes = [4, 6, 128], strides = [1, 1, 1]} : vector<4x16x128xf32> to vector<4x6x128xf32>
    %cst_18 = arith.constant 0.109360687 : f32
    %49 = vector.broadcast %cst_18 : f32 to vector<4x6x128xf32>
    %50 = arith.mulf %49, %48 : vector<4x6x128xf32>
    %51 = arith.addf %47, %50 : vector<4x6x128xf32>
    %52 = vector.extract_strided_slice %5 {offsets = [0, 8, 0], sizes = [4, 6, 128], strides = [1, 1, 1]} : vector<4x16x128xf32> to vector<4x6x128xf32>
    %cst_19 = arith.constant 0.0360007733 : f32
    %53 = vector.broadcast %cst_19 : f32 to vector<4x6x128xf32>
    %54 = arith.mulf %53, %52 : vector<4x6x128xf32>
    %55 = arith.addf %51, %54 : vector<4x6x128xf32>
    %56 = vector.extract_strided_slice %5 {offsets = [0, 9, 0], sizes = [4, 6, 128], strides = [1, 1, 1]} : vector<4x16x128xf32> to vector<4x6x128xf32>
    %cst_20 = arith.constant 0.00759875821 : f32
    %57 = vector.broadcast %cst_20 : f32 to vector<4x6x128xf32>
    %58 = arith.mulf %57, %56 : vector<4x6x128xf32>
    %59 = arith.addf %55, %58 : vector<4x6x128xf32>
    %60 = vector.extract_strided_slice %5 {offsets = [0, 10, 0], sizes = [4, 6, 128], strides = [1, 1, 1]} : vector<4x16x128xf32> to vector<4x6x128xf32>
    %cst_21 = arith.constant 0.00102838012 : f32
    %61 = vector.broadcast %cst_21 : f32 to vector<4x6x128xf32>
    %62 = arith.mulf %61, %60 : vector<4x6x128xf32>
    %63 = arith.addf %59, %62 : vector<4x6x128xf32>
    %64 = vector.extract_strided_slice %8 {offsets = [0, 0, 0], sizes = [4, 6, 128], strides = [1, 1, 1]} : vector<4x16x128xf32> to vector<4x6x128xf32>
    %cst_22 = arith.constant 0.00102838012 : f32
    %65 = vector.broadcast %cst_22 : f32 to vector<4x6x128xf32>
    %66 = arith.mulf %65, %64 : vector<4x6x128xf32>
    %67 = vector.extract_strided_slice %8 {offsets = [0, 1, 0], sizes = [4, 6, 128], strides = [1, 1, 1]} : vector<4x16x128xf32> to vector<4x6x128xf32>
    %cst_23 = arith.constant 0.00759875821 : f32
    %68 = vector.broadcast %cst_23 : f32 to vector<4x6x128xf32>
    %69 = arith.mulf %68, %67 : vector<4x6x128xf32>
    %70 = arith.addf %66, %69 : vector<4x6x128xf32>
    %71 = vector.extract_strided_slice %8 {offsets = [0, 2, 0], sizes = [4, 6, 128], strides = [1, 1, 1]} : vector<4x16x128xf32> to vector<4x6x128xf32>
    %cst_24 = arith.constant 0.0360007733 : f32
    %72 = vector.broadcast %cst_24 : f32 to vector<4x6x128xf32>
    %73 = arith.mulf %72, %71 : vector<4x6x128xf32>
    %74 = arith.addf %70, %73 : vector<4x6x128xf32>
    %75 = vector.extract_strided_slice %8 {offsets = [0, 3, 0], sizes = [4, 6, 128], strides = [1, 1, 1]} : vector<4x16x128xf32> to vector<4x6x128xf32>
    %cst_25 = arith.constant 0.109360687 : f32
    %76 = vector.broadcast %cst_25 : f32 to vector<4x6x128xf32>
    %77 = arith.mulf %76, %75 : vector<4x6x128xf32>
    %78 = arith.addf %74, %77 : vector<4x6x128xf32>
    %79 = vector.extract_strided_slice %8 {offsets = [0, 4, 0], sizes = [4, 6, 128], strides = [1, 1, 1]} : vector<4x16x128xf32> to vector<4x6x128xf32>
    %cst_26 = arith.constant 0.213005543 : f32
    %80 = vector.broadcast %cst_26 : f32 to vector<4x6x128xf32>
    %81 = arith.mulf %80, %79 : vector<4x6x128xf32>
    %82 = arith.addf %78, %81 : vector<4x6x128xf32>
    %83 = vector.extract_strided_slice %8 {offsets = [0, 5, 0], sizes = [4, 6, 128], strides = [1, 1, 1]} : vector<4x16x128xf32> to vector<4x6x128xf32>
    %cst_27 = arith.constant 0.266011715 : f32
    %84 = vector.broadcast %cst_27 : f32 to vector<4x6x128xf32>
    %85 = arith.mulf %84, %83 : vector<4x6x128xf32>
    %86 = arith.addf %82, %85 : vector<4x6x128xf32>
    %87 = vector.extract_strided_slice %8 {offsets = [0, 6, 0], sizes = [4, 6, 128], strides = [1, 1, 1]} : vector<4x16x128xf32> to vector<4x6x128xf32>
    %cst_28 = arith.constant 0.213005543 : f32
    %88 = vector.broadcast %cst_28 : f32 to vector<4x6x128xf32>
    %89 = arith.mulf %88, %87 : vector<4x6x128xf32>
    %90 = arith.addf %86, %89 : vector<4x6x128xf32>
    %91 = vector.extract_strided_slice %8 {offsets = [0, 7, 0], sizes = [4, 6, 128], strides = [1, 1, 1]} : vector<4x16x128xf32> to vector<4x6x128xf32>
    %cst_29 = arith.constant 0.109360687 : f32
    %92 = vector.broadcast %cst_29 : f32 to vector<4x6x128xf32>
    %93 = arith.mulf %92, %91 : vector<4x6x128xf32>
    %94 = arith.addf %90, %93 : vector<4x6x128xf32>
    %95 = vector.extract_strided_slice %8 {offsets = [0, 8, 0], sizes = [4, 6, 128], strides = [1, 1, 1]} : vector<4x16x128xf32> to vector<4x6x128xf32>
    %cst_30 = arith.constant 0.0360007733 : f32
    %96 = vector.broadcast %cst_30 : f32 to vector<4x6x128xf32>
    %97 = arith.mulf %96, %95 : vector<4x6x128xf32>
    %98 = arith.addf %94, %97 : vector<4x6x128xf32>
    %99 = vector.extract_strided_slice %8 {offsets = [0, 9, 0], sizes = [4, 6, 128], strides = [1, 1, 1]} : vector<4x16x128xf32> to vector<4x6x128xf32>
    %cst_31 = arith.constant 0.00759875821 : f32
    %100 = vector.broadcast %cst_31 : f32 to vector<4x6x128xf32>
    %101 = arith.mulf %100, %99 : vector<4x6x128xf32>
    %102 = arith.addf %98, %101 : vector<4x6x128xf32>
    %103 = vector.extract_strided_slice %8 {offsets = [0, 10, 0], sizes = [4, 6, 128], strides = [1, 1, 1]} : vector<4x16x128xf32> to vector<4x6x128xf32>
    %cst_32 = arith.constant 0.00102838012 : f32
    %104 = vector.broadcast %cst_32 : f32 to vector<4x6x128xf32>
    %105 = arith.mulf %104, %103 : vector<4x6x128xf32>
    %106 = arith.addf %102, %105 : vector<4x6x128xf32>
    %107 = vector.extract_strided_slice %12 {offsets = [0, 0, 0], sizes = [4, 6, 128], strides = [1, 1, 1]} : vector<4x16x128xf32> to vector<4x6x128xf32>
    %cst_33 = arith.constant 0.00102838012 : f32
    %108 = vector.broadcast %cst_33 : f32 to vector<4x6x128xf32>
    %109 = arith.mulf %108, %107 : vector<4x6x128xf32>
    %110 = vector.extract_strided_slice %12 {offsets = [0, 1, 0], sizes = [4, 6, 128], strides = [1, 1, 1]} : vector<4x16x128xf32> to vector<4x6x128xf32>
    %cst_34 = arith.constant 0.00759875821 : f32
    %111 = vector.broadcast %cst_34 : f32 to vector<4x6x128xf32>
    %112 = arith.mulf %111, %110 : vector<4x6x128xf32>
    %113 = arith.addf %109, %112 : vector<4x6x128xf32>
    %114 = vector.extract_strided_slice %12 {offsets = [0, 2, 0], sizes = [4, 6, 128], strides = [1, 1, 1]} : vector<4x16x128xf32> to vector<4x6x128xf32>
    %cst_35 = arith.constant 0.0360007733 : f32
    %115 = vector.broadcast %cst_35 : f32 to vector<4x6x128xf32>
    %116 = arith.mulf %115, %114 : vector<4x6x128xf32>
    %117 = arith.addf %113, %116 : vector<4x6x128xf32>
    %118 = vector.extract_strided_slice %12 {offsets = [0, 3, 0], sizes = [4, 6, 128], strides = [1, 1, 1]} : vector<4x16x128xf32> to vector<4x6x128xf32>
    %cst_36 = arith.constant 0.109360687 : f32
    %119 = vector.broadcast %cst_36 : f32 to vector<4x6x128xf32>
    %120 = arith.mulf %119, %118 : vector<4x6x128xf32>
    %121 = arith.addf %117, %120 : vector<4x6x128xf32>
    %122 = vector.extract_strided_slice %12 {offsets = [0, 4, 0], sizes = [4, 6, 128], strides = [1, 1, 1]} : vector<4x16x128xf32> to vector<4x6x128xf32>
    %cst_37 = arith.constant 0.213005543 : f32
    %123 = vector.broadcast %cst_37 : f32 to vector<4x6x128xf32>
    %124 = arith.mulf %123, %122 : vector<4x6x128xf32>
    %125 = arith.addf %121, %124 : vector<4x6x128xf32>
    %126 = vector.extract_strided_slice %12 {offsets = [0, 5, 0], sizes = [4, 6, 128], strides = [1, 1, 1]} : vector<4x16x128xf32> to vector<4x6x128xf32>
    %cst_38 = arith.constant 0.266011715 : f32
    %127 = vector.broadcast %cst_38 : f32 to vector<4x6x128xf32>
    %128 = arith.mulf %127, %126 : vector<4x6x128xf32>
    %129 = arith.addf %125, %128 : vector<4x6x128xf32>
    %130 = vector.extract_strided_slice %12 {offsets = [0, 6, 0], sizes = [4, 6, 128], strides = [1, 1, 1]} : vector<4x16x128xf32> to vector<4x6x128xf32>
    %cst_39 = arith.constant 0.213005543 : f32
    %131 = vector.broadcast %cst_39 : f32 to vector<4x6x128xf32>
    %132 = arith.mulf %131, %130 : vector<4x6x128xf32>
    %133 = arith.addf %129, %132 : vector<4x6x128xf32>
    %134 = vector.extract_strided_slice %12 {offsets = [0, 7, 0], sizes = [4, 6, 128], strides = [1, 1, 1]} : vector<4x16x128xf32> to vector<4x6x128xf32>
    %cst_40 = arith.constant 0.109360687 : f32
    %135 = vector.broadcast %cst_40 : f32 to vector<4x6x128xf32>
    %136 = arith.mulf %135, %134 : vector<4x6x128xf32>
    %137 = arith.addf %133, %136 : vector<4x6x128xf32>
    %138 = vector.extract_strided_slice %12 {offsets = [0, 8, 0], sizes = [4, 6, 128], strides = [1, 1, 1]} : vector<4x16x128xf32> to vector<4x6x128xf32>
    %cst_41 = arith.constant 0.0360007733 : f32
    %139 = vector.broadcast %cst_41 : f32 to vector<4x6x128xf32>
    %140 = arith.mulf %139, %138 : vector<4x6x128xf32>
    %141 = arith.addf %137, %140 : vector<4x6x128xf32>
    %142 = vector.extract_strided_slice %12 {offsets = [0, 9, 0], sizes = [4, 6, 128], strides = [1, 1, 1]} : vector<4x16x128xf32> to vector<4x6x128xf32>
    %cst_42 = arith.constant 0.00759875821 : f32
    %143 = vector.broadcast %cst_42 : f32 to vector<4x6x128xf32>
    %144 = arith.mulf %143, %142 : vector<4x6x128xf32>
    %145 = arith.addf %141, %144 : vector<4x6x128xf32>
    %146 = vector.extract_strided_slice %12 {offsets = [0, 10, 0], sizes = [4, 6, 128], strides = [1, 1, 1]} : vector<4x16x128xf32> to vector<4x6x128xf32>
    %cst_43 = arith.constant 0.00102838012 : f32
    %147 = vector.broadcast %cst_43 : f32 to vector<4x6x128xf32>
    %148 = arith.mulf %147, %146 : vector<4x6x128xf32>
    %149 = arith.addf %145, %148 : vector<4x6x128xf32>
    %150 = vector.extract_strided_slice %16 {offsets = [0, 0, 0], sizes = [4, 6, 128], strides = [1, 1, 1]} : vector<4x16x128xf32> to vector<4x6x128xf32>
    %cst_44 = arith.constant 0.00102838012 : f32
    %151 = vector.broadcast %cst_44 : f32 to vector<4x6x128xf32>
    %152 = arith.mulf %151, %150 : vector<4x6x128xf32>
    %153 = vector.extract_strided_slice %16 {offsets = [0, 1, 0], sizes = [4, 6, 128], strides = [1, 1, 1]} : vector<4x16x128xf32> to vector<4x6x128xf32>
    %cst_45 = arith.constant 0.00759875821 : f32
    %154 = vector.broadcast %cst_45 : f32 to vector<4x6x128xf32>
    %155 = arith.mulf %154, %153 : vector<4x6x128xf32>
    %156 = arith.addf %152, %155 : vector<4x6x128xf32>
    %157 = vector.extract_strided_slice %16 {offsets = [0, 2, 0], sizes = [4, 6, 128], strides = [1, 1, 1]} : vector<4x16x128xf32> to vector<4x6x128xf32>
    %cst_46 = arith.constant 0.0360007733 : f32
    %158 = vector.broadcast %cst_46 : f32 to vector<4x6x128xf32>
    %159 = arith.mulf %158, %157 : vector<4x6x128xf32>
    %160 = arith.addf %156, %159 : vector<4x6x128xf32>
    %161 = vector.extract_strided_slice %16 {offsets = [0, 3, 0], sizes = [4, 6, 128], strides = [1, 1, 1]} : vector<4x16x128xf32> to vector<4x6x128xf32>
    %cst_47 = arith.constant 0.109360687 : f32
    %162 = vector.broadcast %cst_47 : f32 to vector<4x6x128xf32>
    %163 = arith.mulf %162, %161 : vector<4x6x128xf32>
    %164 = arith.addf %160, %163 : vector<4x6x128xf32>
    %165 = vector.extract_strided_slice %16 {offsets = [0, 4, 0], sizes = [4, 6, 128], strides = [1, 1, 1]} : vector<4x16x128xf32> to vector<4x6x128xf32>
    %cst_48 = arith.constant 0.213005543 : f32
    %166 = vector.broadcast %cst_48 : f32 to vector<4x6x128xf32>
    %167 = arith.mulf %166, %165 : vector<4x6x128xf32>
    %168 = arith.addf %164, %167 : vector<4x6x128xf32>
    %169 = vector.extract_strided_slice %16 {offsets = [0, 5, 0], sizes = [4, 6, 128], strides = [1, 1, 1]} : vector<4x16x128xf32> to vector<4x6x128xf32>
    %cst_49 = arith.constant 0.266011715 : f32
    %170 = vector.broadcast %cst_49 : f32 to vector<4x6x128xf32>
    %171 = arith.mulf %170, %169 : vector<4x6x128xf32>
    %172 = arith.addf %168, %171 : vector<4x6x128xf32>
    %173 = vector.extract_strided_slice %16 {offsets = [0, 6, 0], sizes = [4, 6, 128], strides = [1, 1, 1]} : vector<4x16x128xf32> to vector<4x6x128xf32>
    %cst_50 = arith.constant 0.213005543 : f32
    %174 = vector.broadcast %cst_50 : f32 to vector<4x6x128xf32>
    %175 = arith.mulf %174, %173 : vector<4x6x128xf32>
    %176 = arith.addf %172, %175 : vector<4x6x128xf32>
    %177 = vector.extract_strided_slice %16 {offsets = [0, 7, 0], sizes = [4, 6, 128], strides = [1, 1, 1]} : vector<4x16x128xf32> to vector<4x6x128xf32>
    %cst_51 = arith.constant 0.109360687 : f32
    %178 = vector.broadcast %cst_51 : f32 to vector<4x6x128xf32>
    %179 = arith.mulf %178, %177 : vector<4x6x128xf32>
    %180 = arith.addf %176, %179 : vector<4x6x128xf32>
    %181 = vector.extract_strided_slice %16 {offsets = [0, 8, 0], sizes = [4, 6, 128], strides = [1, 1, 1]} : vector<4x16x128xf32> to vector<4x6x128xf32>
    %cst_52 = arith.constant 0.0360007733 : f32
    %182 = vector.broadcast %cst_52 : f32 to vector<4x6x128xf32>
    %183 = arith.mulf %182, %181 : vector<4x6x128xf32>
    %184 = arith.addf %180, %183 : vector<4x6x128xf32>
    %185 = vector.extract_strided_slice %16 {offsets = [0, 9, 0], sizes = [4, 6, 128], strides = [1, 1, 1]} : vector<4x16x128xf32> to vector<4x6x128xf32>
    %cst_53 = arith.constant 0.00759875821 : f32
    %186 = vector.broadcast %cst_53 : f32 to vector<4x6x128xf32>
    %187 = arith.mulf %186, %185 : vector<4x6x128xf32>
    %188 = arith.addf %184, %187 : vector<4x6x128xf32>
    %189 = vector.extract_strided_slice %16 {offsets = [0, 10, 0], sizes = [4, 6, 128], strides = [1, 1, 1]} : vector<4x16x128xf32> to vector<4x6x128xf32>
    %cst_54 = arith.constant 0.00102838012 : f32
    %190 = vector.broadcast %cst_54 : f32 to vector<4x6x128xf32>
    %191 = arith.mulf %190, %189 : vector<4x6x128xf32>
    %192 = arith.addf %188, %191 : vector<4x6x128xf32>
    %193 = vector.extract_strided_slice %20 {offsets = [0, 0, 0], sizes = [4, 6, 128], strides = [1, 1, 1]} : vector<4x16x128xf32> to vector<4x6x128xf32>
    %cst_55 = arith.constant 0.00102838012 : f32
    %194 = vector.broadcast %cst_55 : f32 to vector<4x6x128xf32>
    %195 = arith.mulf %194, %193 : vector<4x6x128xf32>
    %196 = vector.extract_strided_slice %20 {offsets = [0, 1, 0], sizes = [4, 6, 128], strides = [1, 1, 1]} : vector<4x16x128xf32> to vector<4x6x128xf32>
    %cst_56 = arith.constant 0.00759875821 : f32
    %197 = vector.broadcast %cst_56 : f32 to vector<4x6x128xf32>
    %198 = arith.mulf %197, %196 : vector<4x6x128xf32>
    %199 = arith.addf %195, %198 : vector<4x6x128xf32>
    %200 = vector.extract_strided_slice %20 {offsets = [0, 2, 0], sizes = [4, 6, 128], strides = [1, 1, 1]} : vector<4x16x128xf32> to vector<4x6x128xf32>
    %cst_57 = arith.constant 0.0360007733 : f32
    %201 = vector.broadcast %cst_57 : f32 to vector<4x6x128xf32>
    %202 = arith.mulf %201, %200 : vector<4x6x128xf32>
    %203 = arith.addf %199, %202 : vector<4x6x128xf32>
    %204 = vector.extract_strided_slice %20 {offsets = [0, 3, 0], sizes = [4, 6, 128], strides = [1, 1, 1]} : vector<4x16x128xf32> to vector<4x6x128xf32>
    %cst_58 = arith.constant 0.109360687 : f32
    %205 = vector.broadcast %cst_58 : f32 to vector<4x6x128xf32>
    %206 = arith.mulf %205, %204 : vector<4x6x128xf32>
    %207 = arith.addf %203, %206 : vector<4x6x128xf32>
    %208 = vector.extract_strided_slice %20 {offsets = [0, 4, 0], sizes = [4, 6, 128], strides = [1, 1, 1]} : vector<4x16x128xf32> to vector<4x6x128xf32>
    %cst_59 = arith.constant 0.213005543 : f32
    %209 = vector.broadcast %cst_59 : f32 to vector<4x6x128xf32>
    %210 = arith.mulf %209, %208 : vector<4x6x128xf32>
    %211 = arith.addf %207, %210 : vector<4x6x128xf32>
    %212 = vector.extract_strided_slice %20 {offsets = [0, 5, 0], sizes = [4, 6, 128], strides = [1, 1, 1]} : vector<4x16x128xf32> to vector<4x6x128xf32>
    %cst_60 = arith.constant 0.266011715 : f32
    %213 = vector.broadcast %cst_60 : f32 to vector<4x6x128xf32>
    %214 = arith.mulf %213, %212 : vector<4x6x128xf32>
    %215 = arith.addf %211, %214 : vector<4x6x128xf32>
    %216 = vector.extract_strided_slice %20 {offsets = [0, 6, 0], sizes = [4, 6, 128], strides = [1, 1, 1]} : vector<4x16x128xf32> to vector<4x6x128xf32>
    %cst_61 = arith.constant 0.213005543 : f32
    %217 = vector.broadcast %cst_61 : f32 to vector<4x6x128xf32>
    %218 = arith.mulf %217, %216 : vector<4x6x128xf32>
    %219 = arith.addf %215, %218 : vector<4x6x128xf32>
    %220 = vector.extract_strided_slice %20 {offsets = [0, 7, 0], sizes = [4, 6, 128], strides = [1, 1, 1]} : vector<4x16x128xf32> to vector<4x6x128xf32>
    %cst_62 = arith.constant 0.109360687 : f32
    %221 = vector.broadcast %cst_62 : f32 to vector<4x6x128xf32>
    %222 = arith.mulf %221, %220 : vector<4x6x128xf32>
    %223 = arith.addf %219, %222 : vector<4x6x128xf32>
    %224 = vector.extract_strided_slice %20 {offsets = [0, 8, 0], sizes = [4, 6, 128], strides = [1, 1, 1]} : vector<4x16x128xf32> to vector<4x6x128xf32>
    %cst_63 = arith.constant 0.0360007733 : f32
    %225 = vector.broadcast %cst_63 : f32 to vector<4x6x128xf32>
    %226 = arith.mulf %225, %224 : vector<4x6x128xf32>
    %227 = arith.addf %223, %226 : vector<4x6x128xf32>
    %228 = vector.extract_strided_slice %20 {offsets = [0, 9, 0], sizes = [4, 6, 128], strides = [1, 1, 1]} : vector<4x16x128xf32> to vector<4x6x128xf32>
    %cst_64 = arith.constant 0.00759875821 : f32
    %229 = vector.broadcast %cst_64 : f32 to vector<4x6x128xf32>
    %230 = arith.mulf %229, %228 : vector<4x6x128xf32>
    %231 = arith.addf %227, %230 : vector<4x6x128xf32>
    %232 = vector.extract_strided_slice %20 {offsets = [0, 10, 0], sizes = [4, 6, 128], strides = [1, 1, 1]} : vector<4x16x128xf32> to vector<4x6x128xf32>
    %cst_65 = arith.constant 0.00102838012 : f32
    %233 = vector.broadcast %cst_65 : f32 to vector<4x6x128xf32>
    %234 = arith.mulf %233, %232 : vector<4x6x128xf32>
    %235 = arith.addf %231, %234 : vector<4x6x128xf32>
    %236 = arith.mulf %63, %63 : vector<4x6x128xf32>
    %237 = arith.subf %149, %236 : vector<4x6x128xf32>
    %238 = arith.mulf %106, %106 : vector<4x6x128xf32>
    %239 = arith.subf %192, %238 : vector<4x6x128xf32>
    %240 = arith.mulf %63, %106 : vector<4x6x128xf32>
    %241 = arith.subf %235, %240 : vector<4x6x128xf32>
    %cst_66 = arith.constant 2.000000e+00 : f32
    %242 = vector.broadcast %cst_66 : f32 to vector<4x6x128xf32>
    %243 = arith.mulf %242, %63 : vector<4x6x128xf32>
    %244 = arith.mulf %243, %106 : vector<4x6x128xf32>
    %cst_67 = arith.constant 9.99999974E-5 : f32
    %245 = vector.broadcast %cst_67 : f32 to vector<4x6x128xf32>
    %246 = arith.addf %244, %245 : vector<4x6x128xf32>
    %cst_68 = arith.constant 2.000000e+00 : f32
    %247 = vector.broadcast %cst_68 : f32 to vector<4x6x128xf32>
    %248 = arith.mulf %247, %241 : vector<4x6x128xf32>
    %cst_69 = arith.constant 8.99999984E-4 : f32
    %249 = vector.broadcast %cst_69 : f32 to vector<4x6x128xf32>
    %250 = arith.addf %248, %249 : vector<4x6x128xf32>
    %251 = arith.mulf %246, %250 : vector<4x6x128xf32>
    %252 = arith.mulf %63, %63 : vector<4x6x128xf32>
    %253 = arith.mulf %106, %106 : vector<4x6x128xf32>
    %254 = arith.addf %252, %253 : vector<4x6x128xf32>
    %cst_70 = arith.constant 9.99999974E-5 : f32
    %255 = vector.broadcast %cst_70 : f32 to vector<4x6x128xf32>
    %256 = arith.addf %254, %255 : vector<4x6x128xf32>
    %257 = arith.addf %237, %239 : vector<4x6x128xf32>
    %cst_71 = arith.constant 8.99999984E-4 : f32
    %258 = vector.broadcast %cst_71 : f32 to vector<4x6x128xf32>
    %259 = arith.addf %257, %258 : vector<4x6x128xf32>
    %260 = arith.mulf %256, %259 : vector<4x6x128xf32>
    %261 = tpu.reciprocal %260 {approx = true} : vector<4x6x128xf32> -> vector<4x6x128xf32>
    %262 = arith.mulf %251, %261 : vector<4x6x128xf32>
    %263 = tpu.iota {dimensions = array<i32: 2>} : vector<4x6x128xi32>
    %c6_i32 = arith.constant 6 : i32
    %264 = vector.broadcast %c6_i32 : i32 to vector<4x6x128xi32>
    %265 = arith.cmpi slt, %263, %264 : vector<4x6x128xi32>
    %cst_72 = arith.constant 0.000000e+00 : f32
    %266 = vector.broadcast %cst_72 : f32 to vector<4x6x128xf32>
    %267 = arith.select %265, %262, %266 : vector<4x6x128xi1>, vector<4x6x128xf32>
    %268 = vector.shape_cast %267 : vector<4x6x128xf32> to vector<1x4x6x128xf32>
    %cst_73 = arith.constant dense<0.000000e+00> : vector<1xf32>
    %269 = vector.multi_reduction <add>, %268, %cst_73 [1, 2, 3] : vector<1x4x6x128xf32> to vector<1xf32>
    %270 = vector.shape_cast %269 : vector<1xf32> to vector<1x1x1x1xf32>
    %271 = vector.extract %270[0, 0, 0, 0] : f32 from vector<1x1x1x1xf32>
    %272 = arith.subf %0, %1 : vector<4x16x16xf32>
    %273 = math.absf %272 : vector<4x16x16xf32>
    %274 = vector.shape_cast %273 : vector<4x16x16xf32> to vector<1x4x16x16xf32>
    %cst_74 = arith.constant dense<0.000000e+00> : vector<1xf32>
    %275 = vector.multi_reduction <add>, %274, %cst_74 [1, 2, 3] : vector<1x4x16x16xf32> to vector<1xf32>
    %276 = vector.shape_cast %275 : vector<1xf32> to vector<1x1x1x1xf32>
    %277 = vector.extract %276[0, 0, 0, 0] : f32 from vector<1x1x1x1xf32>
    %278 = vector.broadcast %271 : f32 to vector<1x8x128xf32>
    %c0_75 = arith.constant 0 : index
    %c0_76 = arith.constant 0 : index
    %c0_77 = arith.constant 0 : index
    %279 = vector.load %arg4[%c0_75, %c0_76, %c0_77] : memref<1x8x128xf32, #tpu.memory_space<vmem>>, vector<1x8x128xf32>
    tpu.vector_store %arg4[%c0_75, %c0_76, %c0_77], %278 {strides = array<i32>} : memref<1x8x128xf32, #tpu.memory_space<vmem>>, vector<1x8x128xf32>,
    %280 = vector.broadcast %277 : f32 to vector<1x8x128xf32>
    %c0_78 = arith.constant 0 : index
    %c0_79 = arith.constant 0 : index
    %c0_80 = arith.constant 0 : index
    %281 = vector.load %arg5[%c0_78, %c0_79, %c0_80] : memref<1x8x128xf32, #tpu.memory_space<vmem>>, vector<1x8x128xf32>
    tpu.vector_store %arg5[%c0_78, %c0_79, %c0_80], %280 {strides = array<i32>} : memref<1x8x128xf32, #tpu.memory_space<vmem>>, vector<1x8x128xf32>,
    return
  }
  func.func @transform_0(%arg0: i32) -> (i32, i32, i32) {
    %c0_i32 = arith.constant 0 : i32
    %c0_i32_0 = arith.constant 0 : i32
    %c0_i32_1 = arith.constant 0 : i32
    return %arg0, %c0_i32, %c0_i32_0 : i32, i32, i32
  }
  func.func @transform_1(%arg0: i32) -> (i32, i32, i32) {
    %c0_i32 = arith.constant 0 : i32
    %c0_i32_0 = arith.constant 0 : i32
    %c0_i32_1 = arith.constant 0 : i32
    return %arg0, %c0_i32, %c0_i32_0 : i32, i32, i32
  }
  func.func @transform_2(%arg0: i32) -> (i32, i32) {
    %c0_i32 = arith.constant 0 : i32
    %c0_i32_0 = arith.constant 0 : i32
    %c0_i32_1 = arith.constant 0 : i32
    return %c0_i32, %c0_i32_0 : i32, i32
  }
  func.func @transform_3(%arg0: i32) -> (i32, i32, i32) {
    %c0_i32 = arith.constant 0 : i32
    %c0_i32_0 = arith.constant 0 : i32
    %c0_i32_1 = arith.constant 0 : i32
    return %arg0, %c0_i32, %c0_i32_0 : i32, i32, i32
  }
  func.func @transform_4(%arg0: i32) -> (i32, i32, i32) {
    %c0_i32 = arith.constant 0 : i32
    %c0_i32_0 = arith.constant 0 : i32
    %c0_i32_1 = arith.constant 0 : i32
    return %arg0, %c0_i32, %c0_i32_0 : i32, i32, i32
  }
}

</mosaic_0001>

<llo_original>
// kernel: tpu_custom_call.1
$region0: #{tpu_custom_call.1}
  #allocation0 [shape = 'u32[]', space=smem, size = 0x4, offset = 0x4, fixed_abs, tag = 'smem constant byte address 0x4 - core index']
  #allocation1 [shape = 'u32[72,128]{1,0:T(1,128)}', space=vmem, size = 0x9000, scoped, tag = 'internal scratch']
  %s0 = inlined_call_operand.hbm [shape: f32[8,16,16], index: 0, kind: input, shape index: {}]
  %s1 = inlined_call_operand.hbm [shape: f32[8,16,16], index: 1, kind: input, shape index: {}]
  %s2 = inlined_call_operand.hbm [shape: f32[16,128], index: 2, kind: input, shape index: {}]
  %s3 = inlined_call_operand.hbm [shape: f32[2,8,128], index: 3, kind: output, shape index: {0}]
  %s4 = inlined_call_operand.hbm [shape: f32[2,8,128], index: 4, kind: output, shape index: {1}]
  %5 = xla_tuple %s3, %s4
  %s6 = sld [smem:[#allocation0]]
  $region65: #{tpu_custom_call.1} parent=0
    _
  %s8 = ssub.s32 1, %s6
  %s9 = scalar_select 0, %s8, %s6
  $region1: #{tpu_custom_call.1} parent=0
    #allocation2 [shape = 'u8[65536]{0}', space=vmem, size = 0x10000, scoped, tag = 'input window, operand 0']
    #allocation3 [shape = 's32[2]{0}', space=sflag, size = 0x8, scoped, tag = 'scoped memory for tpu_custom_call.1']
    #allocation4 [shape = 's32[2]{0}', space=sflag, size = 0x8, scoped, tag = 'scoped memory for tpu_custom_call.1']
    #allocation5 [shape = 'u8[65536]{0}', space=vmem, size = 0x10000, scoped, tag = 'input window, operand 1']
    #allocation6 [shape = 's32[2]{0}', space=sflag, size = 0x8, scoped, tag = 'scoped memory for tpu_custom_call.1']
    #allocation7 [shape = 'u8[8192]{0}', space=vmem, size = 0x2000, scoped, tag = 'input window, operand 2, single buffered']
    #allocation8 [shape = 'u8[8192]{0}', space=vmem, size = 0x2000, scoped, tag = 'output window, operand 0']
    #allocation9 [shape = 'u8[8192]{0}', space=vmem, size = 0x2000, scoped, tag = 'output window, operand 1']
    #allocation10 [shape = 's32[2]{0}', space=sflag, size = 0x8, scoped, tag = 'scoped memory for tpu_custom_call.1']
    %10 = vsyncpa [#allocation3], 0
    %s11 = scalar_lea.sflag [#allocation3], 1
    %12 = vsyncpa %s11, 0
    %13 = vsyncpa [#allocation6], 0
    %s14 = scalar_lea.sflag [#allocation6], 1
    %15 = vsyncpa %s14, 0
    %16 = vsyncpa [#allocation4], 0
    %s17 = scalar_lea.sflag [#allocation4], 1
    %18 = vsyncpa %s17, 0
    %19 = vsyncpa [#allocation10], 0
    %s20 = scalar_lea.sflag [#allocation10], 1
    %21 = vsyncpa %s20, 0
    loop: start=0, step=1, limit=4
    $region2: #{tpu_custom_call.1} parent=1 // loop_pre_header
      _
    $region3: #{tpu_custom_call.1} parent=1 // loop_header
      %s23 = sphi 0, %s27
      %p24 = scmp.ge.s32.totalorder %s23, 4
      %s33 = sphi 0, %s35
      %s36 = sphi 0, %s33
      %s37 = sphi 0, %s36
      %s53 = sphi 0, %s37
      %s59 = sphi 0, %s61
      %s62 = sphi 0, %s59
      %s63 = sphi 0, %s62
      %s79 = sphi 0, %s63
      %s83 = sphi 0, %s83
      %s85 = sphi 0, %s83
      %s86 = sphi 0, %s85
      %s100 = sphi 0, %s86
      %s106 = sphi 0, %s108
      %s109 = sphi 0, %s106
      %s110 = sphi 0, %s109
      %s126 = sphi 0, %s110
      %s132 = sphi 0, %s134
      %s135 = sphi 0, %s132
      %s136 = sphi 0, %s135
      %s152 = sphi 0, %s136
    $region4: #{tpu_custom_call.1} parent=1 // loop_header_branch
      %26 = sbr.rel (%p24) target = $region8
    $region5: #{tpu_custom_call.1} parent=1 // loop_body
      %s28 = ssub.s32 %s23, 1
      %s29 = ssub.s32 %s23, 2
      %s30 = sadd.s32 %s23, 1
      %s31 = ssub.s32 %s23, %s30
      %p32 = scmp.eq.s32.totalorder %s31, 0
      %s34 = sadd.s32 %s33, 1
      %s35 = scalar_select %p32, %s33, %s34
      %p38 = pneg %p32
      %p39 = scmp.eq.s32.totalorder %s23, 1
      %p40 = por %p38, %p39
      %p41 = scmp.ne.s32.totalorder %s33, %s36
      %p42 = scmp.eq.s32.totalorder %s23, 0
      %p43 = por %p41, %p42
      %p44 = scmp.ne.s32.totalorder %s33, %s36
      %p45 = scmp.eq.s32.totalorder %s28, 1
      %p46 = por %p44, %p45
      %p47 = scmp.ne.s32.totalorder %s36, %s37
      %p48 = scmp.eq.s32.totalorder %s28, 0
      %p49 = por %p47, %p48
      %p50 = scmp.ne.s32.totalorder %s36, %s37
      %p51 = scmp.eq.s32.totalorder %s29, 1
      %p52 = por %p50, %p51
      %p54 = scmp.ne.s32.totalorder %s37, %s53
      %p55 = scmp.eq.s32.totalorder %s29, 0
      %p56 = por %p54, %p55
      %s57 = ssub.s32 %s23, %s30
      %p58 = scmp.eq.s32.totalorder %s57, 0
      %s60 = sadd.s32 %s59, 1
      %s61 = scalar_select %p58, %s59, %s60
      %p64 = pneg %p58
      %p65 = scmp.eq.s32.totalorder %s23, 1
      %p66 = por %p64, %p65
      %p67 = scmp.ne.s32.totalorder %s59, %s62
      %p68 = scmp.eq.s32.totalorder %s23, 0
      %p69 = por %p67, %p68
      %p70 = scmp.ne.s32.totalorder %s59, %s62
      %p71 = scmp.eq.s32.totalorder %s28, 1
      %p72 = por %p70, %p71
      %p73 = scmp.ne.s32.totalorder %s62, %s63
      %p74 = scmp.eq.s32.totalorder %s28, 0
      %p75 = por %p73, %p74
      %p76 = scmp.ne.s32.totalorder %s62, %s63
      %p77 = scmp.eq.s32.totalorder %s29, 1
      %p78 = por %p76, %p77
      %p80 = scmp.ne.s32.totalorder %s63, %s79
      %p81 = scmp.eq.s32.totalorder %s29, 0
      %p82 = por %p80, %p81
      %s84 = sadd.s32 %s83, 1
      %p87 = scmp.eq.s32.totalorder %s23, 1
      %p88 = scmp.ne.s32.totalorder %s83, %s85
      %p89 = scmp.eq.s32.totalorder %s23, 0
      %p90 = por %p88, %p89
      %p91 = scmp.ne.s32.totalorder %s83, %s85
      %p92 = scmp.eq.s32.totalorder %s28, 1
      %p93 = por %p91, %p92
      %p94 = scmp.ne.s32.totalorder %s85, %s86
      %p95 = scmp.eq.s32.totalorder %s28, 0
      %p96 = por %p94, %p95
      %p97 = scmp.ne.s32.totalorder %s85, %s86
      %p98 = scmp.eq.s32.totalorder %s29, 1
      %p99 = por %p97, %p98
      %p101 = scmp.ne.s32.totalorder %s86, %s100
      %p102 = scmp.eq.s32.totalorder %s29, 0
      %p103 = por %p101, %p102
      %s104 = ssub.s32 %s23, %s30
      %p105 = scmp.eq.s32.totalorder %s104, 0
      %s107 = sadd.s32 %s106, 1
      %s108 = scalar_select %p105, %s106, %s107
      %p111 = pneg %p105
      %p112 = scmp.eq.s32.totalorder %s23, 1
      %p113 = por %p111, %p112
      %p114 = scmp.ne.s32.totalorder %s106, %s109
      %p115 = scmp.eq.s32.totalorder %s23, 0
      %p116 = por %p114, %p115
      %p117 = scmp.ne.s32.totalorder %s106, %s109
      %p118 = scmp.eq.s32.totalorder %s28, 1
      %p119 = por %p117, %p118
      %p120 = scmp.ne.s32.totalorder %s109, %s110
      %p121 = scmp.eq.s32.totalorder %s28, 0
      %p122 = por %p120, %p121
      %p123 = scmp.ne.s32.totalorder %s109, %s110
      %p124 = scmp.eq.s32.totalorder %s29, 1
      %p125 = por %p123, %p124
      %p127 = scmp.ne.s32.totalorder %s110, %s126
      %p128 = scmp.eq.s32.totalorder %s29, 0
      %p129 = por %p127, %p128
      %s130 = ssub.s32 %s23, %s30
      %p131 = scmp.eq.s32.totalorder %s130, 0
      %s133 = sadd.s32 %s132, 1
      %s134 = scalar_select %p131, %s132, %s133
      %p137 = pneg %p131
      %p138 = scmp.eq.s32.totalorder %s23, 1
      %p139 = por %p137, %p138
      %p140 = scmp.ne.s32.totalorder %s132, %s135
      %p141 = scmp.eq.s32.totalorder %s23, 0
      %p142 = por %p140, %p141
      %p143 = scmp.ne.s32.totalorder %s132, %s135
      %p144 = scmp.eq.s32.totalorder %s28, 1
      %p145 = por %p143, %p144
      %p146 = scmp.ne.s32.totalorder %s135, %s136
      %p147 = scmp.eq.s32.totalorder %s28, 0
      %p148 = por %p146, %p147
      %p149 = scmp.ne.s32.totalorder %s135, %s136
      %p150 = scmp.eq.s32.totalorder %s29, 1
      %p151 = por %p149, %p150
      %p153 = scmp.ne.s32.totalorder %s136, %s152
      %p154 = scmp.eq.s32.totalorder %s29, 0
      %p155 = por %p153, %p154
      %p156 = scmp.le.s32.totalorder 1, %s23
      %p157 = scmp.lt.s32.totalorder %s23, 3
      %p158 = pnand %p156, %p157
      %p159 = pneg %p158
      // Predicated region
      $region9: #{tpu_custom_call.1} parent=5 // pred_check
        _
      $region10: #{tpu_custom_call.1} parent=5 // pred_check_branch
        %161 = sbr.rel (%p158) target = $region12
      $region11: #{tpu_custom_call.1} parent=5 // pred_region
        %s162 = ssub.s32 %s23, 1
        // Predicated region
        $region13: #{tpu_custom_call.1} parent=11 // pred_check
          %p163 = pneg %p96
        $region14: #{tpu_custom_call.1} parent=11 // pred_check_branch
          %165 = sbr.rel (%p163) target = $region16
        $region15: #{tpu_custom_call.1} parent=11 // pred_region
          %167 = vsyncadd [#allocation6], 0
          %s168 = sshll.u32 %s2, 4
          %s169 = int_to_ptr.hbm [resolvable:$true] %s168
          %s170 = sshll.u32 [#allocation7], 4
          %s171 = int_to_ptr.vmem [resolvable:$true] %s170
          %176 = dma.hbm_to_vmem [thread:$0]  %s169, 256, %s171, [#allocation6], 128, 128, 8
        $region16: #{tpu_custom_call.1} parent=11 // pred_fallthru
          _
      $region12: #{tpu_custom_call.1} parent=5 // pred_fallthru
        _
      %p177 = scmp.lt.s32.totalorder %s23, 2
      // Predicated region
      $region17: #{tpu_custom_call.1} parent=5 // pred_check
        %p178 = pneg %p177
      $region18: #{tpu_custom_call.1} parent=5 // pred_check_branch
        %180 = sbr.rel (%p178) target = $region20
      $region19: #{tpu_custom_call.1} parent=5 // pred_region
        // Predicated region
        $region21: #{tpu_custom_call.1} parent=19 // pred_check
          %p181 = pneg %p43
        $region22: #{tpu_custom_call.1} parent=19 // pred_check_branch
          %183 = sbr.rel (%p181) target = $region24
        $region23: #{tpu_custom_call.1} parent=19 // pred_region
          %s184 = sand.u32 %s33, 1
          %s185 = scalar_lea.sflag [#allocation3], %s184
          %s186 = sand.u32 %s33, 1
          %s187 = smul.addr %s186, 64
          %s188 = scalar_lea.vmem [#allocation2], %s187
          %s189 = smul.u32 4, %s23
          %191 = vsyncadd %s185, 0
          %s192 = smul.addr %s189, 2
          %s193 = smul.addr %s192, 8
          %s194 = scalar_lea.hbm %s0, %s193
          %s195 = sshll.u32 %s194, 4
          %s196 = int_to_ptr.hbm [resolvable:$true] %s195
          %s197 = sshll.u32 %s188, 4
          %s198 = int_to_ptr.vmem [resolvable:$true] %s197
          %203 = dma.hbm_to_vmem [thread:$0]  %s196, 1024, %s198, %s185, 128, 128, 8
        $region24: #{tpu_custom_call.1} parent=19 // pred_fallthru
          _
        // Predicated region
        $region25: #{tpu_custom_call.1} parent=19 // pred_check
          %p204 = pneg %p69
        $region26: #{tpu_custom_call.1} parent=19 // pred_check_branch
          %206 = sbr.rel (%p204) target = $region28
        $region27: #{tpu_custom_call.1} parent=19 // pred_region
          %s207 = sand.u32 %s23, 1
          %s208 = scalar_lea.sflag [#allocation6], %s207
          %s209 = sand.u32 %s59, 1
          %s210 = smul.addr %s209, 64
          %s211 = scalar_lea.vmem [#allocation5], %s210
          %s212 = smul.u32 4, %s23
          %214 = vsyncadd %s208, 0
          %s215 = smul.addr %s212, 2
          %s216 = smul.addr %s215, 8
          %s217 = scalar_lea.hbm %s1, %s216
          %s218 = sshll.u32 %s217, 4
          %s219 = int_to_ptr.hbm [resolvable:$true] %s218
          %s220 = sshll.u32 %s211, 4
          %s221 = int_to_ptr.vmem [resolvable:$true] %s220
          %226 = dma.hbm_to_vmem [thread:$0]  %s219, 1024, %s221, %s208, 128, 128, 8
        $region28: #{tpu_custom_call.1} parent=19 // pred_fallthru
          _
      $region20: #{tpu_custom_call.1} parent=5 // pred_fallthru
        _
      %p227 = scmp.le.s32.totalorder 1, %s23
      %p228 = scmp.lt.s32.totalorder %s23, 3
      %p229 = pnand %p227, %p228
      %p230 = pneg %p229
      // Predicated region
      $region29: #{tpu_custom_call.1} parent=5 // pred_check
        _
      $region30: #{tpu_custom_call.1} parent=5 // pred_check_branch
        %232 = sbr.rel (%p229) target = $region32
      $region31: #{tpu_custom_call.1} parent=5 // pred_region
        %s233 = ssub.s32 %s23, 1
        %s234 = sand.u32 %s36, 1
        %s235 = scalar_lea.sflag [#allocation3], %s234
        %s236 = sand.u32 %s36, 1
        %s237 = smul.addr %s236, 64
        %s238 = scalar_lea.vmem [#allocation2], %s237
        // Predicated region
        $region33: #{tpu_custom_call.1} parent=31 // pred_check
          %p239 = pneg %p49
        $region34: #{tpu_custom_call.1} parent=31 // pred_check_branch
          %241 = sbr.rel (%p239) target = $region36
        $region35: #{tpu_custom_call.1} parent=31 // pred_region
          %243 = dma.done %s235, 1024
        $region36: #{tpu_custom_call.1} parent=31 // pred_fallthru
          _
        %s244 = sand.u32 %s28, 1
        %s245 = scalar_lea.sflag [#allocation6], %s244
        %s246 = sand.u32 %s62, 1
        %s247 = smul.addr %s246, 64
        %s248 = scalar_lea.vmem [#allocation5], %s247
        // Predicated region
        $region37: #{tpu_custom_call.1} parent=31 // pred_check
          %p249 = pneg %p75
        $region38: #{tpu_custom_call.1} parent=31 // pred_check_branch
          %251 = sbr.rel (%p249) target = $region40
        $region39: #{tpu_custom_call.1} parent=31 // pred_region
          %253 = dma.done %s245, 1024
        $region40: #{tpu_custom_call.1} parent=31 // pred_fallthru
          _
        // Predicated region
        $region41: #{tpu_custom_call.1} parent=31 // pred_check
          %p254 = pneg %p96
        $region42: #{tpu_custom_call.1} parent=31 // pred_check_branch
          %256 = sbr.rel (%p254) target = $region44
        $region43: #{tpu_custom_call.1} parent=31 // pred_region
          %258 = dma.done [#allocation6], 256
        $region44: #{tpu_custom_call.1} parent=31 // pred_fallthru
          _
        %s259 = sand.u32 %s36, 1
        %s260 = scalar_lea.sflag [#allocation3], %s259
        %s261 = sand.u32 %s36, 1
        %s262 = smul.addr %s261, 64
        %s263 = scalar_lea.vmem [#allocation2], %s262
        %p264 = pneg %p49
        %p265 = pneg %p46
        %s266 = sand.u32 %s28, 1
        %s267 = scalar_lea.sflag [#allocation6], %s266
        %s268 = sand.u32 %s62, 1
        %s269 = smul.addr %s268, 64
        %s270 = scalar_lea.vmem [#allocation5], %s269
        %p271 = pneg %p75
        %p272 = pneg %p72
        %p273 = pneg %p96
        %p274 = pneg %p93
        %p275 = pneg %p122
        %p276 = pneg %p119
        %s277 = sand.u32 %s109, 1
        %s278 = scalar_lea.sflag [#allocation4], %s277
        %s279 = sand.u32 %s109, 1
        %s280 = smul.addr %s279, 8
        %s281 = scalar_lea.vmem [#allocation8], %s280
        %p282 = pneg %p148
        %p283 = pneg %p145
        %s284 = sand.u32 %s135, 1
        %s285 = scalar_lea.sflag [#allocation10], %s284
        %s286 = sand.u32 %s135, 1
        %s287 = smul.addr %s286, 8
        %s288 = scalar_lea.vmem [#allocation9], %s287
        %s289 = smul.u32 4, %s28
        %s290 = smul.u32 4, %s28
        %v291 = vld [vmem:[%s238] sm:$0xff]
        %v292 = vld [vmem:[%s238 + $0x8] sm:$0xff]
        %v293 = vld [vmem:[%s238 + $0x10] sm:$0xff]
        %v294 = vld [vmem:[%s238 + $0x18] sm:$0xff]
        %v295 = vld [vmem:[%s238 + $0x20] sm:$0xff]
        %v296 = vld [vmem:[%s238 + $0x28] sm:$0xff]
        %v297 = vld [vmem:[%s238 + $0x30] sm:$0xff]
        %v298 = vld [vmem:[%s238 + $0x38] sm:$0xff]
        %v299 = vld [vmem:[%s248] sm:$0xff]
        %v300 = vld [vmem:[%s248 + $0x8] sm:$0xff]
        %v301 = vld [vmem:[%s248 + $0x10] sm:$0xff]
        %v302 = vld [vmem:[%s248 + $0x18] sm:$0xff]
        %v303 = vld [vmem:[%s248 + $0x20] sm:$0xff]
        %v304 = vld [vmem:[%s248 + $0x28] sm:$0xff]
        %v305 = vld [vmem:[%s248 + $0x30] sm:$0xff]
        %v306 = vld [vmem:[%s248 + $0x38] sm:$0xff]
        %v307 = vld [vmem:[#allocation7] sm:$0xff]
        %v308 = vld [vmem:[#allocation7 + $0x8] sm:$0xff]
        %vm309 = vcmask 130048
        %v311 = vsel %vm309, %v291, 0
        %v314 = vsel %vm309, %v292, 0
        %v317 = vsel %vm309, %v293, 0
        %v320 = vsel %vm309, %v294, 0
        %v323 = vsel %vm309, %v295, 0
        %v326 = vsel %vm309, %v296, 0
        %v329 = vsel %vm309, %v297, 0
        %v332 = vsel %vm309, %v298, 0
        %334 = vmatpush.msra.mxu0 0.0
        %335 = vmatpush.msra.mxu0 0.0
        %336 = vmatpush.msra.mxu0 0.0
        %337 = vmatpush.msra.mxu0 0.0
        %338 = vmatpush.msra.mxu0 0.0
        %339 = vmatpush.msra.mxu0 0.0
        %340 = vmatpush.msra.mxu0 0.0
        %341 = vmatpush.msra.mxu0 0.0
        %342 = vmatpush.msra.mxu0 0.0
        %343 = vmatpush.msra.mxu0 0.0
        %344 = vmatpush.msra.mxu0 0.0
        %345 = vmatpush.msra.mxu0 0.0
        %346 = vmatpush.msra.mxu0 0.0
        %347 = vmatpush.msra.mxu0 0.0
        %348 = vmatpush.msra.mxu0 %v308
        %349 = vmatpush.msra.mxu0 %v307
        %350 = vmatmul.f32.gmra.mxu0 %v311
        %v351 = vpop.f32.mrf.mxu0
        %v352 = vadd.f32 0.0, %v351
        %353 = vmatmul.f32.gmra.mxu0 %v314
        %v354 = vpop.f32.mrf.mxu0
        %v355 = vadd.f32 0.0, %v354
        %356 = vmatmul.f32.gmra.mxu0 %v317
        %v357 = vpop.f32.mrf.mxu0
        %v358 = vadd.f32 0.0, %v357
        %359 = vmatmul.f32.gmra.mxu0 %v320
        %v360 = vpop.f32.mrf.mxu0
        %v361 = vadd.f32 0.0, %v360
        %362 = vmatmul.f32.gmra.mxu0 %v323
        %v363 = vpop.f32.mrf.mxu0
        %v364 = vadd.f32 0.0, %v363
        %365 = vmatmul.f32.gmra.mxu0 %v326
        %v366 = vpop.f32.mrf.mxu0
        %v367 = vadd.f32 0.0, %v366
        %368 = vmatmul.f32.gmra.mxu0 %v329
        %v369 = vpop.f32.mrf.mxu0
        %v370 = vadd.f32 0.0, %v369
        %371 = vmatmul.f32.gmra.mxu0 %v332
        %v372 = vpop.f32.mrf.mxu0
        %v373 = vadd.f32 0.0, %v372
        %374 = vdwg.mxu0
        %v376 = vsel %vm309, %v299, 0
        %v379 = vsel %vm309, %v300, 0
        %v382 = vsel %vm309, %v301, 0
        %v385 = vsel %vm309, %v302, 0
        %v388 = vsel %vm309, %v303, 0
        %v391 = vsel %vm309, %v304, 0
        %v394 = vsel %vm309, %v305, 0
        %v397 = vsel %vm309, %v306, 0
        %399 = vmatpush.msra.mxu0 0.0
        %400 = vmatpush.msra.mxu0 0.0
        %401 = vmatpush.msra.mxu0 0.0
        %402 = vmatpush.msra.mxu0 0.0
        %403 = vmatpush.msra.mxu0 0.0
        %404 = vmatpush.msra.mxu0 0.0
        %405 = vmatpush.msra.mxu0 0.0
        %406 = vmatpush.msra.mxu0 0.0
        %407 = vmatpush.msra.mxu0 0.0
        %408 = vmatpush.msra.mxu0 0.0
        %409 = vmatpush.msra.mxu0 0.0
        %410 = vmatpush.msra.mxu0 0.0
        %411 = vmatpush.msra.mxu0 0.0
        %412 = vmatpush.msra.mxu0 0.0
        %413 = vmatpush.msra.mxu0 %v308
        %414 = vmatpush.msra.mxu0 %v307
        %415 = vmatmul.f32.gmra.mxu0 %v376
        %v416 = vpop.f32.mrf.mxu0
        %v417 = vadd.f32 0.0, %v416
        %418 = vmatmul.f32.gmra.mxu0 %v379
        %v419 = vpop.f32.mrf.mxu0
        %v420 = vadd.f32 0.0, %v419
        %421 = vmatmul.f32.gmra.mxu0 %v382
        %v422 = vpop.f32.mrf.mxu0
        %v423 = vadd.f32 0.0, %v422
        %424 = vmatmul.f32.gmra.mxu0 %v385
        %v425 = vpop.f32.mrf.mxu0
        %v426 = vadd.f32 0.0, %v425
        %427 = vmatmul.f32.gmra.mxu0 %v388
        %v428 = vpop.f32.mrf.mxu0
        %v429 = vadd.f32 0.0, %v428
        %430 = vmatmul.f32.gmra.mxu0 %v391
        %v431 = vpop.f32.mrf.mxu0
        %v432 = vadd.f32 0.0, %v431
        %433 = vmatmul.f32.gmra.mxu0 %v394
        %v434 = vpop.f32.mrf.mxu0
        %v435 = vadd.f32 0.0, %v434
        %436 = vmatmul.f32.gmra.mxu0 %v397
        %v437 = vpop.f32.mrf.mxu0
        %v438 = vadd.f32 0.0, %v437
        %439 = vdwg.mxu0
        %v440 = vmul.f32 %v291, %v291
        %v441 = vmul.f32 %v292, %v292
        %v442 = vmul.f32 %v293, %v293
        %v443 = vmul.f32 %v294, %v294
        %v444 = vmul.f32 %v295, %v295
        %v445 = vmul.f32 %v296, %v296
        %v446 = vmul.f32 %v297, %v297
        %v447 = vmul.f32 %v298, %v298
        %v449 = vsel %vm309, %v440, 0
        %v452 = vsel %vm309, %v441, 0
        %v455 = vsel %vm309, %v442, 0
        %v458 = vsel %vm309, %v443, 0
        %v461 = vsel %vm309, %v444, 0
        %v464 = vsel %vm309, %v445, 0
        %v467 = vsel %vm309, %v446, 0
        %v470 = vsel %vm309, %v447, 0
        %472 = vmatpush.msra.mxu0 0.0
        %473 = vmatpush.msra.mxu0 0.0
        %474 = vmatpush.msra.mxu0 0.0
        %475 = vmatpush.msra.mxu0 0.0
        %476 = vmatpush.msra.mxu0 0.0
        %477 = vmatpush.msra.mxu0 0.0
        %478 = vmatpush.msra.mxu0 0.0
        %479 = vmatpush.msra.mxu0 0.0
        %480 = vmatpush.msra.mxu0 0.0
        %481 = vmatpush.msra.mxu0 0.0
        %482 = vmatpush.msra.mxu0 0.0
        %483 = vmatpush.msra.mxu0 0.0
        %484 = vmatpush.msra.mxu0 0.0
        %485 = vmatpush.msra.mxu0 0.0
        %486 = vmatpush.msra.mxu0 %v308
        %487 = vmatpush.msra.mxu0 %v307
        %488 = vmatmul.f32.gmra.mxu0 %v449
        %v489 = vpop.f32.mrf.mxu0
        %v490 = vadd.f32 0.0, %v489
        %491 = vmatmul.f32.gmra.mxu0 %v452
        %v492 = vpop.f32.mrf.mxu0
        %v493 = vadd.f32 0.0, %v492
        %494 = vmatmul.f32.gmra.mxu0 %v455
        %v495 = vpop.f32.mrf.mxu0
        %v496 = vadd.f32 0.0, %v495
        %497 = vmatmul.f32.gmra.mxu0 %v458
        %v498 = vpop.f32.mrf.mxu0
        %v499 = vadd.f32 0.0, %v498
        %500 = vmatmul.f32.gmra.mxu0 %v461
        %v501 = vpop.f32.mrf.mxu0
        %v502 = vadd.f32 0.0, %v501
        %503 = vmatmul.f32.gmra.mxu0 %v464
        %v504 = vpop.f32.mrf.mxu0
        %v505 = vadd.f32 0.0, %v504
        %506 = vmatmul.f32.gmra.mxu0 %v467
        %v507 = vpop.f32.mrf.mxu0
        %v508 = vadd.f32 0.0, %v507
        %509 = vmatmul.f32.gmra.mxu0 %v470
        %v510 = vpop.f32.mrf.mxu0
        %v511 = vadd.f32 0.0, %v510
        %512 = vdwg.mxu0
        %v513 = vmul.f32 %v299, %v299
        %v514 = vmul.f32 %v300, %v300
        %v515 = vmul.f32 %v301, %v301
        %v516 = vmul.f32 %v302, %v302
        %v517 = vmul.f32 %v303, %v303
        %v518 = vmul.f32 %v304, %v304
        %v519 = vmul.f32 %v305, %v305
        %v520 = vmul.f32 %v306, %v306
        %v522 = vsel %vm309, %v513, 0
        %v525 = vsel %vm309, %v514, 0
        %v528 = vsel %vm309, %v515, 0
        %v531 = vsel %vm309, %v516, 0
        %v534 = vsel %vm309, %v517, 0
        %v537 = vsel %vm309, %v518, 0
        %v540 = vsel %vm309, %v519, 0
        %v543 = vsel %vm309, %v520, 0
        %545 = vmatpush.msra.mxu0 0.0
        %546 = vmatpush.msra.mxu0 0.0
        %547 = vmatpush.msra.mxu0 0.0
        %548 = vmatpush.msra.mxu0 0.0
        %549 = vmatpush.msra.mxu0 0.0
        %550 = vmatpush.msra.mxu0 0.0
        %551 = vmatpush.msra.mxu0 0.0
        %552 = vmatpush.msra.mxu0 0.0
        %553 = vmatpush.msra.mxu0 0.0
        %554 = vmatpush.msra.mxu0 0.0
        %555 = vmatpush.msra.mxu0 0.0
        %556 = vmatpush.msra.mxu0 0.0
        %557 = vmatpush.msra.mxu0 0.0
        %558 = vmatpush.msra.mxu0 0.0
        %559 = vmatpush.msra.mxu0 %v308
        %560 = vmatpush.msra.mxu0 %v307
        %561 = vmatmul.f32.gmra.mxu0 %v522
        %v562 = vpop.f32.mrf.mxu0
        %v563 = vadd.f32 0.0, %v562
        %564 = vmatmul.f32.gmra.mxu0 %v525
        %v565 = vpop.f32.mrf.mxu0
        %v566 = vadd.f32 0.0, %v565
        %567 = vmatmul.f32.gmra.mxu0 %v528
        %v568 = vpop.f32.mrf.mxu0
        %v569 = vadd.f32 0.0, %v568
        %570 = vmatmul.f32.gmra.mxu0 %v531
        %v571 = vpop.f32.mrf.mxu0
        %v572 = vadd.f32 0.0, %v571
        %573 = vmatmul.f32.gmra.mxu0 %v534
        %v574 = vpop.f32.mrf.mxu0
        %v575 = vadd.f32 0.0, %v574
        %576 = vmatmul.f32.gmra.mxu0 %v537
        %v577 = vpop.f32.mrf.mxu0
        %v578 = vadd.f32 0.0, %v577
        %579 = vmatmul.f32.gmra.mxu0 %v540
        %v580 = vpop.f32.mrf.mxu0
        %v581 = vadd.f32 0.0, %v580
        %582 = vmatmul.f32.gmra.mxu0 %v543
        %v583 = vpop.f32.mrf.mxu0
        %v584 = vadd.f32 0.0, %v583
        %585 = vdwg.mxu0
        %v586 = vmul.f32 %v291, %v299
        %v587 = vmul.f32 %v292, %v300
        %v588 = vmul.f32 %v293, %v301
        %v589 = vmul.f32 %v294, %v302
        %v590 = vmul.f32 %v295, %v303
        %v591 = vmul.f32 %v296, %v304
        %v592 = vmul.f32 %v297, %v305
        %v593 = vmul.f32 %v298, %v306
        %v595 = vsel %vm309, %v586, 0
        %v598 = vsel %vm309, %v587, 0
        %v601 = vsel %vm309, %v588, 0
        %v604 = vsel %vm309, %v589, 0
        %v607 = vsel %vm309, %v590, 0
        %v610 = vsel %vm309, %v591, 0
        %v613 = vsel %vm309, %v592, 0
        %v616 = vsel %vm309, %v593, 0
        %618 = vmatpush.msra.mxu0 0.0
        %619 = vmatpush.msra.mxu0 0.0
        %620 = vmatpush.msra.mxu0 0.0
        %621 = vmatpush.msra.mxu0 0.0
        %622 = vmatpush.msra.mxu0 0.0
        %623 = vmatpush.msra.mxu0 0.0
        %624 = vmatpush.msra.mxu0 0.0
        %625 = vmatpush.msra.mxu0 0.0
        %626 = vmatpush.msra.mxu0 0.0
        %627 = vmatpush.msra.mxu0 0.0
        %628 = vmatpush.msra.mxu0 0.0
        %629 = vmatpush.msra.mxu0 0.0
        %630 = vmatpush.msra.mxu0 0.0
        %631 = vmatpush.msra.mxu0 0.0
        %632 = vmatpush.msra.mxu0 %v308
        %633 = vmatpush.msra.mxu0 %v307
        %634 = vmatmul.f32.gmra.mxu0 %v595
        %v635 = vpop.f32.mrf.mxu0
        %v636 = vadd.f32 0.0, %v635
        %637 = vmatmul.f32.gmra.mxu0 %v598
        %v638 = vpop.f32.mrf.mxu0
        %v639 = vadd.f32 0.0, %v638
        %640 = vmatmul.f32.gmra.mxu0 %v601
        %v641 = vpop.f32.mrf.mxu0
        %v642 = vadd.f32 0.0, %v641
        %643 = vmatmul.f32.gmra.mxu0 %v604
        %v644 = vpop.f32.mrf.mxu0
        %v645 = vadd.f32 0.0, %v644
        %646 = vmatmul.f32.gmra.mxu0 %v607
        %v647 = vpop.f32.mrf.mxu0
        %v648 = vadd.f32 0.0, %v647
        %649 = vmatmul.f32.gmra.mxu0 %v610
        %v650 = vpop.f32.mrf.mxu0
        %v651 = vadd.f32 0.0, %v650
        %652 = vmatmul.f32.gmra.mxu0 %v613
        %v653 = vpop.f32.mrf.mxu0
        %v654 = vadd.f32 0.0, %v653
        %655 = vmatmul.f32.gmra.mxu0 %v616
        %v656 = vpop.f32.mrf.mxu0
        %v657 = vadd.f32 0.0, %v656
        %658 = vdwg.mxu0
        %v659 = vmul.f32 %v352, 0.0010283801
        %v660 = vmul.f32 %v358, 0.0010283801
        %v661 = vmul.f32 %v364, 0.0010283801
        %v662 = vmul.f32 %v370, 0.0010283801
        %v663 = vmul.f32 %v352, 0.007598758
        %v664 = vmul.f32 %v358, 0.007598758
        %v665 = vmul.f32 %v364, 0.007598758
        %v666 = vmul.f32 %v370, 0.007598758
        %v671 = vrot.slane %v663, 1
        %v672 = vrot.slane %v664, 1
        %v673 = vrot.slane %v665, 1
        %v674 = vrot.slane %v666, 1
        %v679 = vadd.f32 %v659, %v671
        %v680 = vadd.f32 %v660, %v672
        %v681 = vadd.f32 %v661, %v673
        %v682 = vadd.f32 %v662, %v674
        %v683 = vmul.f32 %v352, 0.036000773
        %v684 = vmul.f32 %v358, 0.036000773
        %v685 = vmul.f32 %v364, 0.036000773
        %v686 = vmul.f32 %v370, 0.036000773
        %v691 = vrot.slane %v683, 2
        %v692 = vrot.slane %v684, 2
        %v693 = vrot.slane %v685, 2
        %v694 = vrot.slane %v686, 2
        %v699 = vadd.f32 %v679, %v691
        %v700 = vadd.f32 %v680, %v692
        %v701 = vadd.f32 %v681, %v693
        %v702 = vadd.f32 %v682, %v694
        %v703 = vmul.f32 %v352, 0.10936069
        %v704 = vmul.f32 %v355, 0.10936069
        %v705 = vmul.f32 %v358, 0.10936069
        %v706 = vmul.f32 %v361, 0.10936069
        %v707 = vmul.f32 %v364, 0.10936069
        %v708 = vmul.f32 %v367, 0.10936069
        %v709 = vmul.f32 %v370, 0.10936069
        %v710 = vmul.f32 %v373, 0.10936069
        %vm719 = vcmask 1044480
        %v720 = vrot.slane %v703, 3
        %v721 = vrot.slane %v704, 3
        %v722 = vsel %vm719, %v720, %v721
        %v723 = vrot.slane %v705, 3
        %v724 = vrot.slane %v706, 3
        %v725 = vsel %vm719, %v723, %v724
        %v726 = vrot.slane %v707, 3
        %v727 = vrot.slane %v708, 3
        %v728 = vsel %vm719, %v726, %v727
        %v729 = vrot.slane %v709, 3
        %v730 = vrot.slane %v710, 3
        %v731 = vsel %vm719, %v729, %v730
        %v736 = vadd.f32 %v699, %v722
        %v737 = vadd.f32 %v700, %v725
        %v738 = vadd.f32 %v701, %v728
        %v739 = vadd.f32 %v702, %v731
        %v740 = vmul.f32 %v352, 0.21300554
        %v741 = vmul.f32 %v355, 0.21300554
        %v742 = vmul.f32 %v358, 0.21300554
        %v743 = vmul.f32 %v361, 0.21300554
        %v744 = vmul.f32 %v364, 0.21300554
        %v745 = vmul.f32 %v367, 0.21300554
        %v746 = vmul.f32 %v370, 0.21300554
        %v747 = vmul.f32 %v373, 0.21300554
        %vm756 = vcmask 1043456
        %v757 = vrot.slane %v740, 4
        %v758 = vrot.slane %v741, 4
        %v759 = vsel %vm756, %v757, %v758
        %v760 = vrot.slane %v742, 4
        %v761 = vrot.slane %v743, 4
        %v762 = vsel %vm756, %v760, %v761
        %v763 = vrot.slane %v744, 4
        %v764 = vrot.slane %v745, 4
        %v765 = vsel %vm756, %v763, %v764
        %v766 = vrot.slane %v746, 4
        %v767 = vrot.slane %v747, 4
        %v768 = vsel %vm756, %v766, %v767
        %v773 = vadd.f32 %v736, %v759
        %v774 = vadd.f32 %v737, %v762
        %v775 = vadd.f32 %v738, %v765
        %v776 = vadd.f32 %v739, %v768
        %v777 = vmul.f32 %v352, 0.26601171
        %v778 = vmul.f32 %v355, 0.26601171
        %v779 = vmul.f32 %v358, 0.26601171
        %v780 = vmul.f32 %v361, 0.26601171
        %v781 = vmul.f32 %v364, 0.26601171
        %v782 = vmul.f32 %v367, 0.26601171
        %v783 = vmul.f32 %v370, 0.26601171
        %v784 = vmul.f32 %v373, 0.26601171
        %vm793 = vcmask 1042432
        %v794 = vrot.slane %v777, 5
        %v795 = vrot.slane %v778, 5
        %v796 = vsel %vm793, %v794, %v795
        %v797 = vrot.slane %v779, 5
        %v798 = vrot.slane %v780, 5
        %v799 = vsel %vm793, %v797, %v798
        %v800 = vrot.slane %v781, 5
        %v801 = vrot.slane %v782, 5
        %v802 = vsel %vm793, %v800, %v801
        %v803 = vrot.slane %v783, 5
        %v804 = vrot.slane %v784, 5
        %v805 = vsel %vm793, %v803, %v804
        %v810 = vadd.f32 %v773, %v796
        %v811 = vadd.f32 %v774, %v799
        %v812 = vadd.f32 %v775, %v802
        %v813 = vadd.f32 %v776, %v805
        %vm814 = vcmask 1041408
        %v815 = vrot.slane %v740, 6
        %v816 = vrot.slane %v741, 6
        %v817 = vsel %vm814, %v815, %v816
        %v818 = vrot.slane %v742, 6
        %v819 = vrot.slane %v743, 6
        %v820 = vsel %vm814, %v818, %v819
        %v821 = vrot.slane %v744, 6
        %v822 = vrot.slane %v745, 6
        %v823 = vsel %vm814, %v821, %v822
        %v824 = vrot.slane %v746, 6
        %v825 = vrot.slane %v747, 6
        %v826 = vsel %vm814, %v824, %v825
        %v831 = vadd.f32 %v810, %v817
        %v832 = vadd.f32 %v811, %v820
        %v833 = vadd.f32 %v812, %v823
        %v834 = vadd.f32 %v813, %v826
        %vm835 = vcmask 1040384
        %v836 = vrot.slane %v703, 7
        %v837 = vrot.slane %v704, 7
        %v838 = vsel %vm835, %v836, %v837
        %v839 = vrot.slane %v705, 7
        %v840 = vrot.slane %v706, 7
        %v841 = vsel %vm835, %v839, %v840
        %v842 = vrot.slane %v707, 7
        %v843 = vrot.slane %v708, 7
        %v844 = vsel %vm835, %v842, %v843
        %v845 = vrot.slane %v709, 7
        %v846 = vrot.slane %v710, 7
        %v847 = vsel %vm835, %v845, %v846
        %v852 = vadd.f32 %v831, %v838
        %v853 = vadd.f32 %v832, %v841
        %v854 = vadd.f32 %v833, %v844
        %v855 = vadd.f32 %v834, %v847
        %v856 = vmul.f32 %v355, 0.036000773
        %v857 = vmul.f32 %v361, 0.036000773
        %v858 = vmul.f32 %v367, 0.036000773
        %v859 = vmul.f32 %v373, 0.036000773
        %v860 = vadd.f32 %v852, %v856
        %v861 = vadd.f32 %v853, %v857
        %v862 = vadd.f32 %v854, %v858
        %v863 = vadd.f32 %v855, %v859
        %v864 = vmul.f32 %v355, 0.007598758
        %v865 = vmul.f32 %v361, 0.007598758
        %v866 = vmul.f32 %v367, 0.007598758
        %v867 = vmul.f32 %v373, 0.007598758
        %v872 = vrot.slane %v864, 1
        %v873 = vrot.slane %v865, 1
        %v874 = vrot.slane %v866, 1
        %v875 = vrot.slane %v867, 1
        %v880 = vadd.f32 %v860, %v872
        %v881 = vadd.f32 %v861, %v873
        %v882 = vadd.f32 %v862, %v874
        %v883 = vadd.f32 %v863, %v875
        %v884 = vmul.f32 %v355, 0.0010283801
        %v885 = vmul.f32 %v361, 0.0010283801
        %v886 = vmul.f32 %v367, 0.0010283801
        %v887 = vmul.f32 %v373, 0.0010283801
        %v892 = vrot.slane %v884, 2
        %v893 = vrot.slane %v885, 2
        %v894 = vrot.slane %v886, 2
        %v895 = vrot.slane %v887, 2
        %v900 = vadd.f32 %v880, %v892
        %v901 = vadd.f32 %v881, %v893
        %v902 = vadd.f32 %v882, %v894
        %v903 = vadd.f32 %v883, %v895
        %v904 = vmul.f32 %v417, 0.0010283801
        %v905 = vmul.f32 %v423, 0.0010283801
        %v906 = vmul.f32 %v429, 0.0010283801
        %v907 = vmul.f32 %v435, 0.0010283801
        %v908 = vmul.f32 %v417, 0.007598758
        %v909 = vmul.f32 %v423, 0.007598758
        %v910 = vmul.f32 %v429, 0.007598758
        %v911 = vmul.f32 %v435, 0.007598758
        %v916 = vrot.slane %v908, 1
        %v917 = vrot.slane %v909, 1
        %v918 = vrot.slane %v910, 1
        %v919 = vrot.slane %v911, 1
        %v924 = vadd.f32 %v904, %v916
        %v925 = vadd.f32 %v905, %v917
        %v926 = vadd.f32 %v906, %v918
        %v927 = vadd.f32 %v907, %v919
        %v928 = vmul.f32 %v417, 0.036000773
        %v929 = vmul.f32 %v423, 0.036000773
        %v930 = vmul.f32 %v429, 0.036000773
        %v931 = vmul.f32 %v435, 0.036000773
        %v936 = vrot.slane %v928, 2
        %v937 = vrot.slane %v929, 2
        %v938 = vrot.slane %v930, 2
        %v939 = vrot.slane %v931, 2
        %v944 = vadd.f32 %v924, %v936
        %v945 = vadd.f32 %v925, %v937
        %v946 = vadd.f32 %v926, %v938
        %v947 = vadd.f32 %v927, %v939
        %v948 = vmul.f32 %v417, 0.10936069
        %v949 = vmul.f32 %v420, 0.10936069
        %v950 = vmul.f32 %v423, 0.10936069
        %v951 = vmul.f32 %v426, 0.10936069
        %v952 = vmul.f32 %v429, 0.10936069
        %v953 = vmul.f32 %v432, 0.10936069
        %v954 = vmul.f32 %v435, 0.10936069
        %v955 = vmul.f32 %v438, 0.10936069
        %v964 = vrot.slane %v948, 3
        %v965 = vrot.slane %v949, 3
        %v966 = vsel %vm719, %v964, %v965
        %v967 = vrot.slane %v950, 3
        %v968 = vrot.slane %v951, 3
        %v969 = vsel %vm719, %v967, %v968
        %v970 = vrot.slane %v952, 3
        %v971 = vrot.slane %v953, 3
        %v972 = vsel %vm719, %v970, %v971
        %v973 = vrot.slane %v954, 3
        %v974 = vrot.slane %v955, 3
        %v975 = vsel %vm719, %v973, %v974
        %v980 = vadd.f32 %v944, %v966
        %v981 = vadd.f32 %v945, %v969
        %v982 = vadd.f32 %v946, %v972
        %v983 = vadd.f32 %v947, %v975
        %v984 = vmul.f32 %v417, 0.21300554
        %v985 = vmul.f32 %v420, 0.21300554
        %v986 = vmul.f32 %v423, 0.21300554
        %v987 = vmul.f32 %v426, 0.21300554
        %v988 = vmul.f32 %v429, 0.21300554
        %v989 = vmul.f32 %v432, 0.21300554
        %v990 = vmul.f32 %v435, 0.21300554
        %v991 = vmul.f32 %v438, 0.21300554
        %v1000 = vrot.slane %v984, 4
        %v1001 = vrot.slane %v985, 4
        %v1002 = vsel %vm756, %v1000, %v1001
        %v1003 = vrot.slane %v986, 4
        %v1004 = vrot.slane %v987, 4
        %v1005 = vsel %vm756, %v1003, %v1004
        %v1006 = vrot.slane %v988, 4
        %v1007 = vrot.slane %v989, 4
        %v1008 = vsel %vm756, %v1006, %v1007
        %v1009 = vrot.slane %v990, 4
        %v1010 = vrot.slane %v991, 4
        %v1011 = vsel %vm756, %v1009, %v1010
        %v1016 = vadd.f32 %v980, %v1002
        %v1017 = vadd.f32 %v981, %v1005
        %v1018 = vadd.f32 %v982, %v1008
        %v1019 = vadd.f32 %v983, %v1011
        %v1020 = vmul.f32 %v417, 0.26601171
        %v1021 = vmul.f32 %v420, 0.26601171
        %v1022 = vmul.f32 %v423, 0.26601171
        %v1023 = vmul.f32 %v426, 0.26601171
        %v1024 = vmul.f32 %v429, 0.26601171
        %v1025 = vmul.f32 %v432, 0.26601171
        %v1026 = vmul.f32 %v435, 0.26601171
        %v1027 = vmul.f32 %v438, 0.26601171
        %v1036 = vrot.slane %v1020, 5
        %v1037 = vrot.slane %v1021, 5
        %v1038 = vsel %vm793, %v1036, %v1037
        %v1039 = vrot.slane %v1022, 5
        %v1040 = vrot.slane %v1023, 5
        %v1041 = vsel %vm793, %v1039, %v1040
        %v1042 = vrot.slane %v1024, 5
        %v1043 = vrot.slane %v1025, 5
        %v1044 = vsel %vm793, %v1042, %v1043
        %v1045 = vrot.slane %v1026, 5
        %v1046 = vrot.slane %v1027, 5
        %v1047 = vsel %vm793, %v1045, %v1046
        %v1052 = vadd.f32 %v1016, %v1038
        %v1053 = vadd.f32 %v1017, %v1041
        %v1054 = vadd.f32 %v1018, %v1044
        %v1055 = vadd.f32 %v1019, %v1047
        %v1056 = vrot.slane %v984, 6
        %v1057 = vrot.slane %v985, 6
        %v1058 = vsel %vm814, %v1056, %v1057
        %v1059 = vrot.slane %v986, 6
        %v1060 = vrot.slane %v987, 6
        %v1061 = vsel %vm814, %v1059, %v1060
        %v1062 = vrot.slane %v988, 6
        %v1063 = vrot.slane %v989, 6
        %v1064 = vsel %vm814, %v1062, %v1063
        %v1065 = vrot.slane %v990, 6
        %v1066 = vrot.slane %v991, 6
        %v1067 = vsel %vm814, %v1065, %v1066
        %v1072 = vadd.f32 %v1052, %v1058
        %v1073 = vadd.f32 %v1053, %v1061
        %v1074 = vadd.f32 %v1054, %v1064
        %v1075 = vadd.f32 %v1055, %v1067
        %v1076 = vrot.slane %v948, 7
        %v1077 = vrot.slane %v949, 7
        %v1078 = vsel %vm835, %v1076, %v1077
        %v1079 = vrot.slane %v950, 7
        %v1080 = vrot.slane %v951, 7
        %v1081 = vsel %vm835, %v1079, %v1080
        %v1082 = vrot.slane %v952, 7
        %v1083 = vrot.slane %v953, 7
        %v1084 = vsel %vm835, %v1082, %v1083
        %v1085 = vrot.slane %v954, 7
        %v1086 = vrot.slane %v955, 7
        %v1087 = vsel %vm835, %v1085, %v1086
        %v1092 = vadd.f32 %v1072, %v1078
        %v1093 = vadd.f32 %v1073, %v1081
        %v1094 = vadd.f32 %v1074, %v1084
        %v1095 = vadd.f32 %v1075, %v1087
        %v1096 = vmul.f32 %v420, 0.036000773
        %v1097 = vmul.f32 %v426, 0.036000773
        %v1098 = vmul.f32 %v432, 0.036000773
        %v1099 = vmul.f32 %v438, 0.036000773
        %v1100 = vadd.f32 %v1092, %v1096
        %v1101 = vadd.f32 %v1093, %v1097
        %v1102 = vadd.f32 %v1094, %v1098
        %v1103 = vadd.f32 %v1095, %v1099
        %v1104 = vmul.f32 %v420, 0.007598758
        %v1105 = vmul.f32 %v426, 0.007598758
        %v1106 = vmul.f32 %v432, 0.007598758
        %v1107 = vmul.f32 %v438, 0.007598758
        %v1112 = vrot.slane %v1104, 1
        %v1113 = vrot.slane %v1105, 1
        %v1114 = vrot.slane %v1106, 1
        %v1115 = vrot.slane %v1107, 1
        %v1120 = vadd.f32 %v1100, %v1112
        %v1121 = vadd.f32 %v1101, %v1113
        %v1122 = vadd.f32 %v1102, %v1114
        %v1123 = vadd.f32 %v1103, %v1115
        %v1124 = vmul.f32 %v420, 0.0010283801
        %v1125 = vmul.f32 %v426, 0.0010283801
        %v1126 = vmul.f32 %v432, 0.0010283801
        %v1127 = vmul.f32 %v438, 0.0010283801
        %v1132 = vrot.slane %v1124, 2
        %v1133 = vrot.slane %v1125, 2
        %v1134 = vrot.slane %v1126, 2
        %v1135 = vrot.slane %v1127, 2
        %v1140 = vadd.f32 %v1120, %v1132
        %v1141 = vadd.f32 %v1121, %v1133
        %v1142 = vadd.f32 %v1122, %v1134
        %v1143 = vadd.f32 %v1123, %v1135
        %v1144 = vmul.f32 %v490, 0.0010283801
        %v1145 = vmul.f32 %v496, 0.0010283801
        %v1146 = vmul.f32 %v502, 0.0010283801
        %v1147 = vmul.f32 %v508, 0.0010283801
        %v1148 = vmul.f32 %v490, 0.007598758
        %v1149 = vmul.f32 %v496, 0.007598758
        %v1150 = vmul.f32 %v502, 0.007598758
        %v1151 = vmul.f32 %v508, 0.007598758
        %v1156 = vrot.slane %v1148, 1
        %v1157 = vrot.slane %v1149, 1
        %v1158 = vrot.slane %v1150, 1
        %v1159 = vrot.slane %v1151, 1
        %v1164 = vadd.f32 %v1144, %v1156
        %v1165 = vadd.f32 %v1145, %v1157
        %v1166 = vadd.f32 %v1146, %v1158
        %v1167 = vadd.f32 %v1147, %v1159
        %v1168 = vmul.f32 %v490, 0.036000773
        %v1169 = vmul.f32 %v496, 0.036000773
        %v1170 = vmul.f32 %v502, 0.036000773
        %v1171 = vmul.f32 %v508, 0.036000773
        %v1176 = vrot.slane %v1168, 2
        %v1177 = vrot.slane %v1169, 2
        %v1178 = vrot.slane %v1170, 2
        %v1179 = vrot.slane %v1171, 2
        %v1184 = vadd.f32 %v1164, %v1176
        %v1185 = vadd.f32 %v1165, %v1177
        %v1186 = vadd.f32 %v1166, %v1178
        %v1187 = vadd.f32 %v1167, %v1179
        %v1188 = vmul.f32 %v490, 0.10936069
        %v1189 = vmul.f32 %v493, 0.10936069
        %v1190 = vmul.f32 %v496, 0.10936069
        %v1191 = vmul.f32 %v499, 0.10936069
        %v1192 = vmul.f32 %v502, 0.10936069
        %v1193 = vmul.f32 %v505, 0.10936069
        %v1194 = vmul.f32 %v508, 0.10936069
        %v1195 = vmul.f32 %v511, 0.10936069
        %v1204 = vrot.slane %v1188, 3
        %v1205 = vrot.slane %v1189, 3
        %v1206 = vsel %vm719, %v1204, %v1205
        %v1207 = vrot.slane %v1190, 3
        %v1208 = vrot.slane %v1191, 3
        %v1209 = vsel %vm719, %v1207, %v1208
        %v1210 = vrot.slane %v1192, 3
        %v1211 = vrot.slane %v1193, 3
        %v1212 = vsel %vm719, %v1210, %v1211
        %v1213 = vrot.slane %v1194, 3
        %v1214 = vrot.slane %v1195, 3
        %v1215 = vsel %vm719, %v1213, %v1214
        %v1220 = vadd.f32 %v1184, %v1206
        %v1221 = vadd.f32 %v1185, %v1209
        %v1222 = vadd.f32 %v1186, %v1212
        %v1223 = vadd.f32 %v1187, %v1215
        %v1224 = vmul.f32 %v490, 0.21300554
        %v1225 = vmul.f32 %v493, 0.21300554
        %v1226 = vmul.f32 %v496, 0.21300554
        %v1227 = vmul.f32 %v499, 0.21300554
        %v1228 = vmul.f32 %v502, 0.21300554
        %v1229 = vmul.f32 %v505, 0.21300554
        %v1230 = vmul.f32 %v508, 0.21300554
        %v1231 = vmul.f32 %v511, 0.21300554
        %v1240 = vrot.slane %v1224, 4
        %v1241 = vrot.slane %v1225, 4
        %v1242 = vsel %vm756, %v1240, %v1241
        %v1243 = vrot.slane %v1226, 4
        %v1244 = vrot.slane %v1227, 4
        %v1245 = vsel %vm756, %v1243, %v1244
        %v1246 = vrot.slane %v1228, 4
        %v1247 = vrot.slane %v1229, 4
        %v1248 = vsel %vm756, %v1246, %v1247
        %v1249 = vrot.slane %v1230, 4
        %v1250 = vrot.slane %v1231, 4
        %v1251 = vsel %vm756, %v1249, %v1250
        %v1256 = vadd.f32 %v1220, %v1242
        %v1257 = vadd.f32 %v1221, %v1245
        %v1258 = vadd.f32 %v1222, %v1248
        %v1259 = vadd.f32 %v1223, %v1251
        %v1260 = vmul.f32 %v490, 0.26601171
        %v1261 = vmul.f32 %v493, 0.26601171
        %v1262 = vmul.f32 %v496, 0.26601171
        %v1263 = vmul.f32 %v499, 0.26601171
        %v1264 = vmul.f32 %v502, 0.26601171
        %v1265 = vmul.f32 %v505, 0.26601171
        %v1266 = vmul.f32 %v508, 0.26601171
        %v1267 = vmul.f32 %v511, 0.26601171
        %v1276 = vrot.slane %v1260, 5
        %v1277 = vrot.slane %v1261, 5
        %v1278 = vsel %vm793, %v1276, %v1277
        %v1279 = vrot.slane %v1262, 5
        %v1280 = vrot.slane %v1263, 5
        %v1281 = vsel %vm793, %v1279, %v1280
        %v1282 = vrot.slane %v1264, 5
        %v1283 = vrot.slane %v1265, 5
        %v1284 = vsel %vm793, %v1282, %v1283
        %v1285 = vrot.slane %v1266, 5
        %v1286 = vrot.slane %v1267, 5
        %v1287 = vsel %vm793, %v1285, %v1286
        %v1292 = vadd.f32 %v1256, %v1278
        %v1293 = vadd.f32 %v1257, %v1281
        %v1294 = vadd.f32 %v1258, %v1284
        %v1295 = vadd.f32 %v1259, %v1287
        %v1296 = vrot.slane %v1224, 6
        %v1297 = vrot.slane %v1225, 6
        %v1298 = vsel %vm814, %v1296, %v1297
        %v1299 = vrot.slane %v1226, 6
        %v1300 = vrot.slane %v1227, 6
        %v1301 = vsel %vm814, %v1299, %v1300
        %v1302 = vrot.slane %v1228, 6
        %v1303 = vrot.slane %v1229, 6
        %v1304 = vsel %vm814, %v1302, %v1303
        %v1305 = vrot.slane %v1230, 6
        %v1306 = vrot.slane %v1231, 6
        %v1307 = vsel %vm814, %v1305, %v1306
        %v1312 = vadd.f32 %v1292, %v1298
        %v1313 = vadd.f32 %v1293, %v1301
        %v1314 = vadd.f32 %v1294, %v1304
        %v1315 = vadd.f32 %v1295, %v1307
        %v1316 = vrot.slane %v1188, 7
        %v1317 = vrot.slane %v1189, 7
        %v1318 = vsel %vm835, %v1316, %v1317
        %v1319 = vrot.slane %v1190, 7
        %v1320 = vrot.slane %v1191, 7
        %v1321 = vsel %vm835, %v1319, %v1320
        %v1322 = vrot.slane %v1192, 7
        %v1323 = vrot.slane %v1193, 7
        %v1324 = vsel %vm835, %v1322, %v1323
        %v1325 = vrot.slane %v1194, 7
        %v1326 = vrot.slane %v1195, 7
        %v1327 = vsel %vm835, %v1325, %v1326
        %v1332 = vadd.f32 %v1312, %v1318
        %v1333 = vadd.f32 %v1313, %v1321
        %v1334 = vadd.f32 %v1314, %v1324
        %v1335 = vadd.f32 %v1315, %v1327
        %v1336 = vmul.f32 %v493, 0.036000773
        %v1337 = vmul.f32 %v499, 0.036000773
        %v1338 = vmul.f32 %v505, 0.036000773
        %v1339 = vmul.f32 %v511, 0.036000773
        %v1340 = vadd.f32 %v1332, %v1336
        %v1341 = vadd.f32 %v1333, %v1337
        %v1342 = vadd.f32 %v1334, %v1338
        %v1343 = vadd.f32 %v1335, %v1339
        %v1344 = vmul.f32 %v493, 0.007598758
        %v1345 = vmul.f32 %v499, 0.007598758
        %v1346 = vmul.f32 %v505, 0.007598758
        %v1347 = vmul.f32 %v511, 0.007598758
        %v1352 = vrot.slane %v1344, 1
        %v1353 = vrot.slane %v1345, 1
        %v1354 = vrot.slane %v1346, 1
        %v1355 = vrot.slane %v1347, 1
        %v1360 = vadd.f32 %v1340, %v1352
        %v1361 = vadd.f32 %v1341, %v1353
        %v1362 = vadd.f32 %v1342, %v1354
        %v1363 = vadd.f32 %v1343, %v1355
        %v1364 = vmul.f32 %v493, 0.0010283801
        %v1365 = vmul.f32 %v499, 0.0010283801
        %v1366 = vmul.f32 %v505, 0.0010283801
        %v1367 = vmul.f32 %v511, 0.0010283801
        %v1372 = vrot.slane %v1364, 2
        %v1373 = vrot.slane %v1365, 2
        %v1374 = vrot.slane %v1366, 2
        %v1375 = vrot.slane %v1367, 2
        %v1380 = vadd.f32 %v1360, %v1372
        %v1381 = vadd.f32 %v1361, %v1373
        %v1382 = vadd.f32 %v1362, %v1374
        %v1383 = vadd.f32 %v1363, %v1375
        %v1384 = vmul.f32 %v563, 0.0010283801
        %v1385 = vmul.f32 %v569, 0.0010283801
        %v1386 = vmul.f32 %v575, 0.0010283801
        %v1387 = vmul.f32 %v581, 0.0010283801
        %v1388 = vmul.f32 %v563, 0.007598758
        %v1389 = vmul.f32 %v569, 0.007598758
        %v1390 = vmul.f32 %v575, 0.007598758
        %v1391 = vmul.f32 %v581, 0.007598758
        %v1396 = vrot.slane %v1388, 1
        %v1397 = vrot.slane %v1389, 1
        %v1398 = vrot.slane %v1390, 1
        %v1399 = vrot.slane %v1391, 1
        %v1404 = vadd.f32 %v1384, %v1396
        %v1405 = vadd.f32 %v1385, %v1397
        %v1406 = vadd.f32 %v1386, %v1398
        %v1407 = vadd.f32 %v1387, %v1399
        %v1408 = vmul.f32 %v563, 0.036000773
        %v1409 = vmul.f32 %v569, 0.036000773
        %v1410 = vmul.f32 %v575, 0.036000773
        %v1411 = vmul.f32 %v581, 0.036000773
        %v1416 = vrot.slane %v1408, 2
        %v1417 = vrot.slane %v1409, 2
        %v1418 = vrot.slane %v1410, 2
        %v1419 = vrot.slane %v1411, 2
        %v1424 = vadd.f32 %v1404, %v1416
        %v1425 = vadd.f32 %v1405, %v1417
        %v1426 = vadd.f32 %v1406, %v1418
        %v1427 = vadd.f32 %v1407, %v1419
        %v1428 = vmul.f32 %v563, 0.10936069
        %v1429 = vmul.f32 %v566, 0.10936069
        %v1430 = vmul.f32 %v569, 0.10936069
        %v1431 = vmul.f32 %v572, 0.10936069
        %v1432 = vmul.f32 %v575, 0.10936069
        %v1433 = vmul.f32 %v578, 0.10936069
        %v1434 = vmul.f32 %v581, 0.10936069
        %v1435 = vmul.f32 %v584, 0.10936069
        %v1444 = vrot.slane %v1428, 3
        %v1445 = vrot.slane %v1429, 3
        %v1446 = vsel %vm719, %v1444, %v1445
        %v1447 = vrot.slane %v1430, 3
        %v1448 = vrot.slane %v1431, 3
        %v1449 = vsel %vm719, %v1447, %v1448
        %v1450 = vrot.slane %v1432, 3
        %v1451 = vrot.slane %v1433, 3
        %v1452 = vsel %vm719, %v1450, %v1451
        %v1453 = vrot.slane %v1434, 3
        %v1454 = vrot.slane %v1435, 3
        %v1455 = vsel %vm719, %v1453, %v1454
        %v1460 = vadd.f32 %v1424, %v1446
        %v1461 = vadd.f32 %v1425, %v1449
        %v1462 = vadd.f32 %v1426, %v1452
        %v1463 = vadd.f32 %v1427, %v1455
        %v1464 = vmul.f32 %v563, 0.21300554
        %v1465 = vmul.f32 %v566, 0.21300554
        %v1466 = vmul.f32 %v569, 0.21300554
        %v1467 = vmul.f32 %v572, 0.21300554
        %v1468 = vmul.f32 %v575, 0.21300554
        %v1469 = vmul.f32 %v578, 0.21300554
        %v1470 = vmul.f32 %v581, 0.21300554
        %v1471 = vmul.f32 %v584, 0.21300554
        %v1480 = vrot.slane %v1464, 4
        %v1481 = vrot.slane %v1465, 4
        %v1482 = vsel %vm756, %v1480, %v1481
        %v1483 = vrot.slane %v1466, 4
        %v1484 = vrot.slane %v1467, 4
        %v1485 = vsel %vm756, %v1483, %v1484
        %v1486 = vrot.slane %v1468, 4
        %v1487 = vrot.slane %v1469, 4
        %v1488 = vsel %vm756, %v1486, %v1487
        %v1489 = vrot.slane %v1470, 4
        %v1490 = vrot.slane %v1471, 4
        %v1491 = vsel %vm756, %v1489, %v1490
        %v1496 = vadd.f32 %v1460, %v1482
        %v1497 = vadd.f32 %v1461, %v1485
        %v1498 = vadd.f32 %v1462, %v1488
        %v1499 = vadd.f32 %v1463, %v1491
        %v1500 = vmul.f32 %v563, 0.26601171
        %v1501 = vmul.f32 %v566, 0.26601171
        %v1502 = vmul.f32 %v569, 0.26601171
        %v1503 = vmul.f32 %v572, 0.26601171
        %v1504 = vmul.f32 %v575, 0.26601171
        %v1505 = vmul.f32 %v578, 0.26601171
        %v1506 = vmul.f32 %v581, 0.26601171
        %v1507 = vmul.f32 %v584, 0.26601171
        %v1516 = vrot.slane %v1500, 5
        %v1517 = vrot.slane %v1501, 5
        %v1518 = vsel %vm793, %v1516, %v1517
        %v1519 = vrot.slane %v1502, 5
        %v1520 = vrot.slane %v1503, 5
        %v1521 = vsel %vm793, %v1519, %v1520
        %v1522 = vrot.slane %v1504, 5
        %v1523 = vrot.slane %v1505, 5
        %v1524 = vsel %vm793, %v1522, %v1523
        %v1525 = vrot.slane %v1506, 5
        %v1526 = vrot.slane %v1507, 5
        %v1527 = vsel %vm793, %v1525, %v1526
        %v1532 = vadd.f32 %v1496, %v1518
        %v1533 = vadd.f32 %v1497, %v1521
        %v1534 = vadd.f32 %v1498, %v1524
        %v1535 = vadd.f32 %v1499, %v1527
        %v1536 = vrot.slane %v1464, 6
        %v1537 = vrot.slane %v1465, 6
        %v1538 = vsel %vm814, %v1536, %v1537
        %v1539 = vrot.slane %v1466, 6
        %v1540 = vrot.slane %v1467, 6
        %v1541 = vsel %vm814, %v1539, %v1540
        %v1542 = vrot.slane %v1468, 6
        %v1543 = vrot.slane %v1469, 6
        %v1544 = vsel %vm814, %v1542, %v1543
        %v1545 = vrot.slane %v1470, 6
        %v1546 = vrot.slane %v1471, 6
        %v1547 = vsel %vm814, %v1545, %v1546
        %v1552 = vadd.f32 %v1532, %v1538
        %v1553 = vadd.f32 %v1533, %v1541
        %v1554 = vadd.f32 %v1534, %v1544
        %v1555 = vadd.f32 %v1535, %v1547
        %v1556 = vrot.slane %v1428, 7
        %v1557 = vrot.slane %v1429, 7
        %v1558 = vsel %vm835, %v1556, %v1557
        %v1559 = vrot.slane %v1430, 7
        %v1560 = vrot.slane %v1431, 7
        %v1561 = vsel %vm835, %v1559, %v1560
        %v1562 = vrot.slane %v1432, 7
        %v1563 = vrot.slane %v1433, 7
        %v1564 = vsel %vm835, %v1562, %v1563
        %v1565 = vrot.slane %v1434, 7
        %v1566 = vrot.slane %v1435, 7
        %v1567 = vsel %vm835, %v1565, %v1566
        %v1572 = vadd.f32 %v1552, %v1558
        %v1573 = vadd.f32 %v1553, %v1561
        %v1574 = vadd.f32 %v1554, %v1564
        %v1575 = vadd.f32 %v1555, %v1567
        %v1576 = vmul.f32 %v566, 0.036000773
        %v1577 = vmul.f32 %v572, 0.036000773
        %v1578 = vmul.f32 %v578, 0.036000773
        %v1579 = vmul.f32 %v584, 0.036000773
        %v1580 = vadd.f32 %v1572, %v1576
        %v1581 = vadd.f32 %v1573, %v1577
        %v1582 = vadd.f32 %v1574, %v1578
        %v1583 = vadd.f32 %v1575, %v1579
        %v1584 = vmul.f32 %v566, 0.007598758
        %v1585 = vmul.f32 %v572, 0.007598758
        %v1586 = vmul.f32 %v578, 0.007598758
        %v1587 = vmul.f32 %v584, 0.007598758
        %v1592 = vrot.slane %v1584, 1
        %v1593 = vrot.slane %v1585, 1
        %v1594 = vrot.slane %v1586, 1
        %v1595 = vrot.slane %v1587, 1
        %v1600 = vadd.f32 %v1580, %v1592
        %v1601 = vadd.f32 %v1581, %v1593
        %v1602 = vadd.f32 %v1582, %v1594
        %v1603 = vadd.f32 %v1583, %v1595
        %v1604 = vmul.f32 %v566, 0.0010283801
        %v1605 = vmul.f32 %v572, 0.0010283801
        %v1606 = vmul.f32 %v578, 0.0010283801
        %v1607 = vmul.f32 %v584, 0.0010283801
        %v1612 = vrot.slane %v1604, 2
        %v1613 = vrot.slane %v1605, 2
        %v1614 = vrot.slane %v1606, 2
        %v1615 = vrot.slane %v1607, 2
        %v1620 = vadd.f32 %v1600, %v1612
        %v1621 = vadd.f32 %v1601, %v1613
        %v1622 = vadd.f32 %v1602, %v1614
        %v1623 = vadd.f32 %v1603, %v1615
        %v1624 = vmul.f32 %v636, 0.0010283801
        %v1625 = vmul.f32 %v642, 0.0010283801
        %v1626 = vmul.f32 %v648, 0.0010283801
        %v1627 = vmul.f32 %v654, 0.0010283801
        %v1628 = vmul.f32 %v636, 0.007598758
        %v1629 = vmul.f32 %v642, 0.007598758
        %v1630 = vmul.f32 %v648, 0.007598758
        %v1631 = vmul.f32 %v654, 0.007598758
        %v1636 = vrot.slane %v1628, 1
        %v1637 = vrot.slane %v1629, 1
        %v1638 = vrot.slane %v1630, 1
        %v1639 = vrot.slane %v1631, 1
        %v1644 = vadd.f32 %v1624, %v1636
        %v1645 = vadd.f32 %v1625, %v1637
        %v1646 = vadd.f32 %v1626, %v1638
        %v1647 = vadd.f32 %v1627, %v1639
        %v1648 = vmul.f32 %v636, 0.036000773
        %v1649 = vmul.f32 %v642, 0.036000773
        %v1650 = vmul.f32 %v648, 0.036000773
        %v1651 = vmul.f32 %v654, 0.036000773
        %v1656 = vrot.slane %v1648, 2
        %v1657 = vrot.slane %v1649, 2
        %v1658 = vrot.slane %v1650, 2
        %v1659 = vrot.slane %v1651, 2
        %v1664 = vadd.f32 %v1644, %v1656
        %v1665 = vadd.f32 %v1645, %v1657
        %v1666 = vadd.f32 %v1646, %v1658
        %v1667 = vadd.f32 %v1647, %v1659
        %v1668 = vmul.f32 %v636, 0.10936069
        %v1669 = vmul.f32 %v639, 0.10936069
        %v1670 = vmul.f32 %v642, 0.10936069
        %v1671 = vmul.f32 %v645, 0.10936069
        %v1672 = vmul.f32 %v648, 0.10936069
        %v1673 = vmul.f32 %v651, 0.10936069
        %v1674 = vmul.f32 %v654, 0.10936069
        %v1675 = vmul.f32 %v657, 0.10936069
        %v1684 = vrot.slane %v1668, 3
        %v1685 = vrot.slane %v1669, 3
        %v1686 = vsel %vm719, %v1684, %v1685
        %v1687 = vrot.slane %v1670, 3
        %v1688 = vrot.slane %v1671, 3
        %v1689 = vsel %vm719, %v1687, %v1688
        %v1690 = vrot.slane %v1672, 3
        %v1691 = vrot.slane %v1673, 3
        %v1692 = vsel %vm719, %v1690, %v1691
        %v1693 = vrot.slane %v1674, 3
        %v1694 = vrot.slane %v1675, 3
        %v1695 = vsel %vm719, %v1693, %v1694
        %v1700 = vadd.f32 %v1664, %v1686
        %v1701 = vadd.f32 %v1665, %v1689
        %v1702 = vadd.f32 %v1666, %v1692
        %v1703 = vadd.f32 %v1667, %v1695
        %v1704 = vmul.f32 %v636, 0.21300554
        %v1705 = vmul.f32 %v639, 0.21300554
        %v1706 = vmul.f32 %v642, 0.21300554
        %v1707 = vmul.f32 %v645, 0.21300554
        %v1708 = vmul.f32 %v648, 0.21300554
        %v1709 = vmul.f32 %v651, 0.21300554
        %v1710 = vmul.f32 %v654, 0.21300554
        %v1711 = vmul.f32 %v657, 0.21300554
        %v1720 = vrot.slane %v1704, 4
        %v1721 = vrot.slane %v1705, 4
        %v1722 = vsel %vm756, %v1720, %v1721
        %v1723 = vrot.slane %v1706, 4
        %v1724 = vrot.slane %v1707, 4
        %v1725 = vsel %vm756, %v1723, %v1724
        %v1726 = vrot.slane %v1708, 4
        %v1727 = vrot.slane %v1709, 4
        %v1728 = vsel %vm756, %v1726, %v1727
        %v1729 = vrot.slane %v1710, 4
        %v1730 = vrot.slane %v1711, 4
        %v1731 = vsel %vm756, %v1729, %v1730
        %v1736 = vadd.f32 %v1700, %v1722
        %v1737 = vadd.f32 %v1701, %v1725
        %v1738 = vadd.f32 %v1702, %v1728
        %v1739 = vadd.f32 %v1703, %v1731
        %v1740 = vmul.f32 %v636, 0.26601171
        %v1741 = vmul.f32 %v639, 0.26601171
        %v1742 = vmul.f32 %v642, 0.26601171
        %v1743 = vmul.f32 %v645, 0.26601171
        %v1744 = vmul.f32 %v648, 0.26601171
        %v1745 = vmul.f32 %v651, 0.26601171
        %v1746 = vmul.f32 %v654, 0.26601171
        %v1747 = vmul.f32 %v657, 0.26601171
        %v1756 = vrot.slane %v1740, 5
        %v1757 = vrot.slane %v1741, 5
        %v1758 = vsel %vm793, %v1756, %v1757
        %v1759 = vrot.slane %v1742, 5
        %v1760 = vrot.slane %v1743, 5
        %v1761 = vsel %vm793, %v1759, %v1760
        %v1762 = vrot.slane %v1744, 5
        %v1763 = vrot.slane %v1745, 5
        %v1764 = vsel %vm793, %v1762, %v1763
        %v1765 = vrot.slane %v1746, 5
        %v1766 = vrot.slane %v1747, 5
        %v1767 = vsel %vm793, %v1765, %v1766
        %v1772 = vadd.f32 %v1736, %v1758
        %v1773 = vadd.f32 %v1737, %v1761
        %v1774 = vadd.f32 %v1738, %v1764
        %v1775 = vadd.f32 %v1739, %v1767
        %v1776 = vrot.slane %v1704, 6
        %v1777 = vrot.slane %v1705, 6
        %v1778 = vsel %vm814, %v1776, %v1777
        %v1779 = vrot.slane %v1706, 6
        %v1780 = vrot.slane %v1707, 6
        %v1781 = vsel %vm814, %v1779, %v1780
        %v1782 = vrot.slane %v1708, 6
        %v1783 = vrot.slane %v1709, 6
        %v1784 = vsel %vm814, %v1782, %v1783
        %v1785 = vrot.slane %v1710, 6
        %v1786 = vrot.slane %v1711, 6
        %v1787 = vsel %vm814, %v1785, %v1786
        %v1792 = vadd.f32 %v1772, %v1778
        %v1793 = vadd.f32 %v1773, %v1781
        %v1794 = vadd.f32 %v1774, %v1784
        %v1795 = vadd.f32 %v1775, %v1787
        %v1796 = vrot.slane %v1668, 7
        %v1797 = vrot.slane %v1669, 7
        %v1798 = vsel %vm835, %v1796, %v1797
        %v1799 = vrot.slane %v1670, 7
        %v1800 = vrot.slane %v1671, 7
        %v1801 = vsel %vm835, %v1799, %v1800
        %v1802 = vrot.slane %v1672, 7
        %v1803 = vrot.slane %v1673, 7
        %v1804 = vsel %vm835, %v1802, %v1803
        %v1805 = vrot.slane %v1674, 7
        %v1806 = vrot.slane %v1675, 7
        %v1807 = vsel %vm835, %v1805, %v1806
        %v1812 = vadd.f32 %v1792, %v1798
        %v1813 = vadd.f32 %v1793, %v1801
        %v1814 = vadd.f32 %v1794, %v1804
        %v1815 = vadd.f32 %v1795, %v1807
        %v1816 = vmul.f32 %v639, 0.036000773
        %v1817 = vmul.f32 %v645, 0.036000773
        %v1818 = vmul.f32 %v651, 0.036000773
        %v1819 = vmul.f32 %v657, 0.036000773
        %v1820 = vadd.f32 %v1812, %v1816
        %v1821 = vadd.f32 %v1813, %v1817
        %v1822 = vadd.f32 %v1814, %v1818
        %v1823 = vadd.f32 %v1815, %v1819
        %v1824 = vmul.f32 %v639, 0.007598758
        %v1825 = vmul.f32 %v645, 0.007598758
        %v1826 = vmul.f32 %v651, 0.007598758
        %v1827 = vmul.f32 %v657, 0.007598758
        %v1832 = vrot.slane %v1824, 1
        %v1833 = vrot.slane %v1825, 1
        %v1834 = vrot.slane %v1826, 1
        %v1835 = vrot.slane %v1827, 1
        %v1840 = vadd.f32 %v1820, %v1832
        %v1841 = vadd.f32 %v1821, %v1833
        %v1842 = vadd.f32 %v1822, %v1834
        %v1843 = vadd.f32 %v1823, %v1835
        %v1844 = vmul.f32 %v639, 0.0010283801
        %v1845 = vmul.f32 %v645, 0.0010283801
        %v1846 = vmul.f32 %v651, 0.0010283801
        %v1847 = vmul.f32 %v657, 0.0010283801
        %v1852 = vrot.slane %v1844, 2
        %v1853 = vrot.slane %v1845, 2
        %v1854 = vrot.slane %v1846, 2
        %v1855 = vrot.slane %v1847, 2
        %v1860 = vadd.f32 %v1840, %v1852
        %v1861 = vadd.f32 %v1841, %v1853
        %v1862 = vadd.f32 %v1842, %v1854
        %v1863 = vadd.f32 %v1843, %v1855
        %v1864 = vmul.f32 %v900, %v900
        %v1865 = vmul.f32 %v901, %v901
        %v1866 = vmul.f32 %v902, %v902
        %v1867 = vmul.f32 %v903, %v903
        %v1868 = vsub.f32 %v1380, %v1864
        %v1869 = vsub.f32 %v1381, %v1865
        %v1870 = vsub.f32 %v1382, %v1866
        %v1871 = vsub.f32 %v1383, %v1867
        %v1872 = vmul.f32 %v1140, %v1140
        %v1873 = vmul.f32 %v1141, %v1141
        %v1874 = vmul.f32 %v1142, %v1142
        %v1875 = vmul.f32 %v1143, %v1143
        %v1876 = vsub.f32 %v1620, %v1872
        %v1877 = vsub.f32 %v1621, %v1873
        %v1878 = vsub.f32 %v1622, %v1874
        %v1879 = vsub.f32 %v1623, %v1875
        %v1880 = vmul.f32 %v900, %v1140
        %v1881 = vmul.f32 %v901, %v1141
        %v1882 = vmul.f32 %v902, %v1142
        %v1883 = vmul.f32 %v903, %v1143
        %v1884 = vsub.f32 %v1860, %v1880
        %v1885 = vsub.f32 %v1861, %v1881
        %v1886 = vsub.f32 %v1862, %v1882
        %v1887 = vsub.f32 %v1863, %v1883
        %v1888 = vmul.f32 %v900, 2.0
        %v1889 = vmul.f32 %v901, 2.0
        %v1890 = vmul.f32 %v902, 2.0
        %v1891 = vmul.f32 %v903, 2.0
        %v1892 = vmul.f32 %v1888, %v1140
        %v1893 = vmul.f32 %v1889, %v1141
        %v1894 = vmul.f32 %v1890, %v1142
        %v1895 = vmul.f32 %v1891, %v1143
        %v1896 = vadd.f32 %v1892, 0.0001
        %v1897 = vadd.f32 %v1893, 0.0001
        %v1898 = vadd.f32 %v1894, 0.0001
        %v1899 = vadd.f32 %v1895, 0.0001
        %v1900 = vmul.f32 %v1884, 2.0
        %v1901 = vmul.f32 %v1885, 2.0
        %v1902 = vmul.f32 %v1886, 2.0
        %v1903 = vmul.f32 %v1887, 2.0
        %v1904 = vadd.f32 %v1900, 0.0009
        %v1905 = vadd.f32 %v1901, 0.0009
        %v1906 = vadd.f32 %v1902, 0.0009
        %v1907 = vadd.f32 %v1903, 0.0009
        %v1908 = vmul.f32 %v1896, %v1904
        %v1909 = vmul.f32 %v1897, %v1905
        %v1910 = vmul.f32 %v1898, %v1906
        %v1911 = vmul.f32 %v1899, %v1907
        %v1912 = vadd.f32 %v1864, %v1872
        %v1913 = vadd.f32 %v1865, %v1873
        %v1914 = vadd.f32 %v1866, %v1874
        %v1915 = vadd.f32 %v1867, %v1875
        %v1916 = vadd.f32 %v1912, 0.0001
        %v1917 = vadd.f32 %v1913, 0.0001
        %v1918 = vadd.f32 %v1914, 0.0001
        %v1919 = vadd.f32 %v1915, 0.0001
        %v1920 = vadd.f32 %v1868, %v1876
        %v1921 = vadd.f32 %v1869, %v1877
        %v1922 = vadd.f32 %v1870, %v1878
        %v1923 = vadd.f32 %v1871, %v1879
        %v1924 = vadd.f32 %v1920, 0.0009
        %v1925 = vadd.f32 %v1921, 0.0009
        %v1926 = vadd.f32 %v1922, 0.0009
        %v1927 = vadd.f32 %v1923, 0.0009
        %v1928 = vmul.f32 %v1916, %v1924
        %v1929 = vmul.f32 %v1917, %v1925
        %v1930 = vmul.f32 %v1918, %v1926
        %v1931 = vmul.f32 %v1919, %v1927
        %v1932 = vrcp.pop %v1928
        %v1933 = vrcp.pop %v1929
        %v1934 = vrcp.pop %v1930
        %v1935 = vrcp.pop %v1931
        %v1936 = vmul.f32 %v1908, %v1932
        %v1937 = vmul.f32 %v1909, %v1933
        %v1938 = vmul.f32 %v1910, %v1934
        %v1939 = vmul.f32 %v1911, %v1935
        %v1940 = vlaneseq
        %v1941 = vand.u32 %v1940, 127
        %vm1942 = vcmp.lt.s32.totalorder %v1941, 6
        %v1943 = vsel %vm1942, %v1936, 0.0
        %v1944 = vsel %vm1942, %v1937, 0.0
        %v1945 = vsel %vm1942, %v1938, 0.0
        %v1946 = vsel %vm1942, %v1939, 0.0
        %vm1947 = vcmask 1045504
        %v1948 = vsel %vm1947, %v1943, 0.0
        %v1949 = vsel %vm1947, %v1944, 0.0
        %v1950 = vadd.f32 %v1948, %v1949
        %v1951 = vsel %vm1947, %v1945, 0.0
        %v1952 = vadd.f32 %v1950, %v1951
        %v1953 = vsel %vm1947, %v1946, 0.0
        %v1954 = vadd.f32 %v1952, %v1953
        %1955 = vadd.xlane.f32.xlu0 %v1954
        %v1956 = vpop.xlane.xlu0 %1955
        %v1957 = vrot.slane %v1956, 4
        %v1958 = vadd.f32 %v1956, %v1957
        %v1959 = vrot.slane %v1958, 2
        %v1960 = vadd.f32 %v1958, %v1959
        %v1961 = vrot.slane %v1960, 1
        %v1962 = vadd.f32 %v1960, %v1961
        %s1963 = vtos %v1962
        %v1964 = vsub.f32 %v291, %v299
        %v1965 = vsub.f32 %v292, %v300
        %v1966 = vsub.f32 %v293, %v301
        %v1967 = vsub.f32 %v294, %v302
        %v1968 = vsub.f32 %v295, %v303
        %v1969 = vsub.f32 %v296, %v304
        %v1970 = vsub.f32 %v297, %v305
        %v1971 = vsub.f32 %v298, %v306
        %v1972 = vand.u32 2147483647, %v1964
        %v1973 = vand.u32 2147483647, %v1965
        %v1974 = vand.u32 2147483647, %v1966
        %v1975 = vand.u32 2147483647, %v1967
        %v1976 = vand.u32 2147483647, %v1968
        %v1977 = vand.u32 2147483647, %v1969
        %v1978 = vand.u32 2147483647, %v1970
        %v1979 = vand.u32 2147483647, %v1971
        %v1980 = vsel %vm309, %v1972, 0.0
        %v1981 = vsel %vm309, %v1973, 0.0
        %v1982 = vadd.f32 %v1980, %v1981
        %v1983 = vsel %vm309, %v1974, 0.0
        %v1984 = vadd.f32 %v1982, %v1983
        %v1985 = vsel %vm309, %v1975, 0.0
        %v1986 = vadd.f32 %v1984, %v1985
        %v1987 = vsel %vm309, %v1976, 0.0
        %v1988 = vadd.f32 %v1986, %v1987
        %v1989 = vsel %vm309, %v1977, 0.0
        %v1990 = vadd.f32 %v1988, %v1989
        %v1991 = vsel %vm309, %v1978, 0.0
        %v1992 = vadd.f32 %v1990, %v1991
        %v1993 = vsel %vm309, %v1979, 0.0
        %v1994 = vadd.f32 %v1992, %v1993
        %1995 = vadd.xlane.f32.xlu0 %v1994
        %v1996 = vpop.xlane.xlu0 %1995
        %v1997 = vrot.slane %v1996, 4
        %v1998 = vadd.f32 %v1996, %v1997
        %v1999 = vrot.slane %v1998, 2
        %v2000 = vadd.f32 %v1998, %v1999
        %v2001 = vrot.slane %v2000, 1
        %v2002 = vadd.f32 %v2000, %v2001
        %s2003 = vtos %v2002
        %v2004 = vstv %s1963
        %2005 = vst [vmem:[%s281] sm:$0xff] %v2004
        %v2006 = vstv %s2003
        %2007 = vst [vmem:[%s288] sm:$0xff] %v2006
        %s2008 = sand.u32 %s109, 1
        %s2009 = scalar_lea.sflag [#allocation4], %s2008
        %s2010 = sand.u32 %s109, 1
        %s2011 = smul.addr %s2010, 8
        %s2012 = scalar_lea.vmem [#allocation8], %s2011
        %s2013 = sand.u32 %s135, 1
        %s2014 = scalar_lea.sflag [#allocation10], %s2013
        %s2015 = sand.u32 %s135, 1
        %s2016 = smul.addr %s2015, 8
        %s2017 = scalar_lea.vmem [#allocation9], %s2016
        // Predicated region
        $region45: #{tpu_custom_call.1} parent=31 // pred_check
          %p2018 = pneg %p119
        $region46: #{tpu_custom_call.1} parent=31 // pred_check_branch
          %2020 = sbr.rel (%p2018) target = $region48
        $region47: #{tpu_custom_call.1} parent=31 // pred_region
          %2022 = vsyncadd %s2009, 0
          %s2023 = smul.addr %s28, 8
          %s2024 = scalar_lea.hbm %s3, %s2023
          %s2026 = sshll.u32 %s2012, 4
          %s2027 = int_to_ptr.vmem [resolvable:$true] %s2026
          %s2028 = sshll.u32 %s2024, 4
          %s2029 = int_to_ptr.hbm [resolvable:$true] %s2028
          %2031 = dma.vmem_to_hbm [thread:$0]  %s2027, 128, %s2029, %s2009
        $region48: #{tpu_custom_call.1} parent=31 // pred_fallthru
          _
        // Predicated region
        $region49: #{tpu_custom_call.1} parent=31 // pred_check
          %p2032 = pneg %p145
        $region50: #{tpu_custom_call.1} parent=31 // pred_check_branch
          %2034 = sbr.rel (%p2032) target = $region52
        $region51: #{tpu_custom_call.1} parent=31 // pred_region
          %2036 = vsyncadd %s2014, 0
          %s2037 = smul.addr %s28, 8
          %s2038 = scalar_lea.hbm %s4, %s2037
          %s2040 = sshll.u32 %s2017, 4
          %s2041 = int_to_ptr.vmem [resolvable:$true] %s2040
          %s2042 = sshll.u32 %s2038, 4
          %s2043 = int_to_ptr.hbm [resolvable:$true] %s2042
          %2045 = dma.vmem_to_hbm [thread:$0]  %s2041, 128, %s2043, %s2014
        $region52: #{tpu_custom_call.1} parent=31 // pred_fallthru
          _
      $region32: #{tpu_custom_call.1} parent=5 // pred_fallthru
        _
      %p2046 = scmp.le.s32.totalorder 2, %s23
      // Predicated region
      $region53: #{tpu_custom_call.1} parent=5 // pred_check
        %p2047 = pneg %p2046
      $region54: #{tpu_custom_call.1} parent=5 // pred_check_branch
        %2049 = sbr.rel (%p2047) target = $region56
      $region55: #{tpu_custom_call.1} parent=5 // pred_region
        %s2050 = ssub.s32 %s23, 2
        // Predicated region
        $region57: #{tpu_custom_call.1} parent=55 // pred_check
          %p2051 = pneg %p125
        $region58: #{tpu_custom_call.1} parent=55 // pred_check_branch
          %2053 = sbr.rel (%p2051) target = $region60
        $region59: #{tpu_custom_call.1} parent=55 // pred_region
          %s2054 = sand.u32 %s110, 1
          %s2055 = scalar_lea.sflag [#allocation4], %s2054
          %s2056 = sand.u32 %s110, 1
          %s2057 = smul.addr %s2056, 8
          %s2058 = scalar_lea.vmem [#allocation8], %s2057
          %2060 = dma.done %s2055, 128
        $region60: #{tpu_custom_call.1} parent=55 // pred_fallthru
          _
        // Predicated region
        $region61: #{tpu_custom_call.1} parent=55 // pred_check
          %p2061 = pneg %p151
        $region62: #{tpu_custom_call.1} parent=55 // pred_check_branch
          %2063 = sbr.rel (%p2061) target = $region64
        $region63: #{tpu_custom_call.1} parent=55 // pred_region
          %s2064 = sand.u32 %s136, 1
          %s2065 = scalar_lea.sflag [#allocation10], %s2064
          %s2066 = sand.u32 %s136, 1
          %s2067 = smul.addr %s2066, 8
          %s2068 = scalar_lea.vmem [#allocation9], %s2067
          %2070 = dma.done %s2065, 128
        $region64: #{tpu_custom_call.1} parent=55 // pred_fallthru
          _
      $region56: #{tpu_custom_call.1} parent=5 // pred_fallthru
        _
    $region6: #{tpu_custom_call.1} parent=1 // loop_footer
      %s27 = sadd.s32 1, %s23
    $region7: #{tpu_custom_call.1} parent=1 // loop_footer_branch
      %22 = sbr.rel target = $region3
    $region8: #{tpu_custom_call.1} parent=1 // loop_exit
      _
    %2071 = vsyncpa [#allocation3], 1
    %s2072 = scalar_lea.sflag [#allocation3], 1
    %2073 = vsyncpa %s2072, 1
    %2074 = vsyncpa [#allocation6], 1
    %s2075 = scalar_lea.sflag [#allocation6], 1
    %2076 = vsyncpa %s2075, 1
    %2077 = vsyncpa [#allocation4], 1
    %s2078 = scalar_lea.sflag [#allocation4], 1
    %2079 = vsyncpa %s2078, 1
    %2080 = vsyncpa [#allocation10], 1
    %s2081 = scalar_lea.sflag [#allocation10], 1
    %2082 = vsyncpa %s2081, 1

</llo_original>
